<compile_context>
chip_gen: v6e
topology: v6e:2x2x1
jax: 0.10.0
libtpu: 0.0.40
codegen_flags: <defaults>
</compile_context>

<pallas_src>
import math
import jax
import jax.numpy as jnp
from jax.experimental import pallas as pl
from jax.experimental.pallas import tpu as pltpu

EPS = 1e-5  # torch.nn.LayerNorm default eps


def _fused_embed3_kernel(x_ref, g_ref, w1_ref, w2_ref, w3a_ref, w3b_ref, aux_ref,
                         o_ref, h_bf_ref, e_prev_ref):
    """Grid = (3 layers [outer, 'arbitrary'], row tiles [inner]).

    Per layer l:
      row tile 0 : fill h_bf = (E_{l-1} @ W_l + b_l) for ALL rows (bf16 scratch)
      every tile : e = LN(relu(G[tile, :] @ h_bf)) ; write to output block (l, i)
                   and (for l < 2) into the e_prev bf16 scratch feeding layer l+1.
    """
    l = pl.program_id(0)
    i = pl.program_id(1)
    tm = o_ref.shape[1]

    b = aux_ref[0, 0:1, :]      # (1, D) f32 bias of layer l
    gamma = aux_ref[0, 1:2, :]  # (1, D) f32 LN weight
    beta = aux_ref[0, 2:3, :]   # (1, D) f32 LN bias

    # ---- dense projection for the whole layer, once per layer (row tile 0) ----
    @pl.when(i == 0)
    def _():
        @pl.when(l == 0)
        def _():
            h = jnp.dot(x_ref[...], w1_ref[...], preferred_element_type=jnp.float32)
            h_bf_ref[...] = (h + b).astype(jnp.bfloat16)

        @pl.when(l == 1)
        def _():
            h = jnp.dot(e_prev_ref[0], w2_ref[...], preferred_element_type=jnp.float32)
            h_bf_ref[...] = (h + b).astype(jnp.bfloat16)

        @pl.when(l == 2)
        def _():
            # concat(e1, e2) @ W3  ==  e1 @ W3a + e2 @ W3b  (no concat materialized)
            h = (jnp.dot(e_prev_ref[0], w3a_ref[...], preferred_element_type=jnp.float32)
                 + jnp.dot(e_prev_ref[1], w3b_ref[...], preferred_element_type=jnp.float32))
            h_bf_ref[...] = (h + b).astype(jnp.bfloat16)

    # ---- graph filter (streamed G row tile) + relu + LayerNorm, f32 ----
    filt = jnp.dot(g_ref[...], h_bf_ref[...], preferred_element_type=jnp.float32)  # (tm, D)
    h = jnp.maximum(filt, 0.0)
    mean = jnp.mean(h, axis=-1, keepdims=True)
    c = h - mean
    var = jnp.mean(c * c, axis=-1, keepdims=True)
    e = c * jax.lax.rsqrt(var + EPS) * gamma + beta    # (tm, D) f32

    o_ref[0] = e

    # feed next layer's projection (layers 0 and 1 only)
    row0 = pl.multiple_of(i * tm, tm)
    e_bf = e.astype(jnp.bfloat16)

    @pl.when(l == 0)
    def _():
        e_prev_ref[0, pl.ds(row0, tm), :] = e_bf

    @pl.when(l == 1)
    def _():
        e_prev_ref[1, pl.ds(row0, tm), :] = e_bf


def _pick_row_tile(n):
    # Prefer 256/512-row tiles (fills the 256x256 MXU on v6e/v7x); 128 is native on v5e.
    for tm in (512, 256, 128):
        if n % tm == 0 and 2 * tm * n * 2 <= 24 * 1024 * 1024:  # double-buffered bf16 G tile
            return tm
    # TODO(synk): pad N for graphs whose node count is not a multiple of 128.
    return n if n < 128 else 128


def _fused_forward_pallas(x_bf, g_bf, w1_bf, w2_bf, w3a_bf, w3b_bf, aux):
    n, d_in = x_bf.shape
    d = w1_bf.shape[1]
    tm = _pick_row_tile(n)
    t = pl.cdiv(n, tm)

    flops = (2 * n * d_in * d            # X   @ W1
             + 2 * n * d * d             # e1  @ W2
             + 2 * n * (2 * d) * d       # e12 @ W3 (split)
             + 3 * 2 * n * n * d)        # three G @ H filters
    g_reads = 3 if t > 1 else 1          # G is re-streamed once per layer when tiled
    bytes_accessed = (2 * (n * d_in + g_reads * n * n + d_in * d + d * d + 2 * d * d)
                      + 4 * 9 * d
                      + 4 * 3 * n * d)

    vmem = pl.BlockSpec(memory_space=pltpu.MemorySpace.VMEM)
    return pl.pallas_call(
        _fused_embed3_kernel,
        out_shape=jax.ShapeDtypeStruct((3, n, d), jnp.float32),
        grid=(3, t),
        in_specs=[
            vmem,                                                   # embeddings (N, D_in) bf16, resident
            pl.BlockSpec((tm, n), lambda l, i: (i, 0)),             # G row tiles (tm, N) bf16, streamed
            vmem, vmem, vmem, vmem,                                 # W1, W2, W3a, W3b bf16, resident
            pl.BlockSpec((1, 3, d), lambda l, i: (l, 0, 0)),        # aux (3,3,D) f32, per-layer slice
        ],
        out_specs=pl.BlockSpec((1, tm, d), lambda l, i: (l, i, 0)),
        scratch_shapes=[
            pltpu.VMEM((n, d), jnp.bfloat16),       # h_bf   : projected H of current layer
            pltpu.VMEM((2, n, d), jnp.bfloat16),    # e_prev : LN outputs of layers 1 & 2
        ],
        compiler_params=pltpu.CompilerParams(
            dimension_semantics=("arbitrary", "arbitrary"),
            vmem_limit_bytes=48 * 1024 * 1024,
        ),
        cost_estimate=pl.CostEstimate(
            flops=flops, transcendentals=3 * n, bytes_accessed=bytes_accessed),
    )(x_bf, g_bf, w1_bf, w2_bf, w3a_bf, w3b_bf, aux)


def init_conv_layer(key, d_in, d_out):
    """Matches Conv_layer.reset_parameters: uniform(-1/sqrt(d_out), 1/sqrt(d_out))."""
    stdv = 1.0 / math.sqrt(d_out)
    kw, kb = jax.random.split(key)
    w = jax.random.uniform(kw, (d_in, d_out), jnp.float32, -stdv, stdv)
    b = jax.random.uniform(kb, (d_out,), jnp.float32, -stdv, stdv)
    return w, b


def init_params(key, input_dim, out_dim):
    hidden_dim = out_dim  # module sets hidden_dim = out_dim in __init__
    k1, k2, k3 = jax.random.split(key, 3)
    w1, b1 = init_conv_layer(k1, input_dim, hidden_dim)
    w2, b2 = init_conv_layer(k2, hidden_dim, hidden_dim)
    w3, b3 = init_conv_layer(k3, hidden_dim * 2, out_dim)
    return {
        "w1": w1, "b1": b1,
        "w2": w2, "b2": b2,
        "w3": w3, "b3": b3,
        # LayerNorm default init: weight = 1, bias = 0
        "ln1_w": jnp.ones((hidden_dim,), jnp.float32), "ln1_b": jnp.zeros((hidden_dim,), jnp.float32),
        "ln2_w": jnp.ones((hidden_dim,), jnp.float32), "ln2_b": jnp.zeros((hidden_dim,), jnp.float32),
        "ln3_w": jnp.ones((out_dim,), jnp.float32),    "ln3_b": jnp.zeros((out_dim,), jnp.float32),
    }


def conv_embedding_3_dense_forward(x, params, G, embeddings):
    """Mirrors Conv_Embedding_3_dense.forward.

    x: 1-based integer indices (as in the torch module, idx = x - 1).
    Returns (embed[idx, :], recon_loss).
    """
    recon_loss = jnp.array([0.0], dtype=jnp.float32)
    idx = x - 1
    d = params["w1"].shape[1]

    # Per-layer (bias, LN weight, LN bias) packed into one (3, 3, D) operand.
    # NOTE: assumes hidden_dim == out_dim (true by construction in the module).
    aux = jnp.stack([
        params["b1"], params["ln1_w"], params["ln1_b"],
        params["b2"], params["ln2_w"], params["ln2_b"],
        params["b3"], params["ln3_w"], params["ln3_b"],
    ], axis=0).astype(jnp.float32).reshape(3, 3, d)

    bf = jnp.bfloat16
    w3a = params["w3"][:d].astype(bf)
    w3b = params["w3"][d:].astype(bf)

    out3 = _fused_forward_pallas(
        embeddings.astype(bf), G.astype(bf),
        params["w1"].astype(bf), params["w2"].astype(bf), w3a, w3b, aux)
    # out3: (3, N, D) f32, out3[l] = e_{l+1}

    # Row gather (glue, plain JAX — data-dependent, tiny), then lay out as
    # torch's concat([e1, e2, e3], dim=1) row order.
    gathered = out3[:, idx, :]                                     # (3, B, D)
    out = jnp.transpose(gathered, (1, 0, 2)).reshape(idx.shape[0], 3 * d)
    return out, recon_loss


if __name__ == "__main__":
    key = jax.random.PRNGKey(0)
    k_param, k_embed, k_g, k_idx = jax.random.split(key, 4)

    # Small, 128-aligned shapes (lane-dense stores / full MXU tiles).
    N = 128          # number of nodes / embedding rows
    INPUT_DIM = 128  # embedding input dim
    OUT_DIM = 128    # out_dim (== hidden_dim inside the module)
    BATCH = 8        # number of lookup indices

    params = init_params(k_param, INPUT_DIM, OUT_DIM)
    embeddings = jax.random.normal(k_embed, (N, INPUT_DIM), jnp.float32)
    G = jax.random.normal(k_g, (N, N), jnp.float32) * 0.1
    x = jax.random.randint(k_idx, (BATCH,), minval=1, maxval=N + 1)  # 1-based indices

    out, recon = conv_embedding_3_dense_forward(x, params, G, embeddings)
    out = jax.block_until_ready(out)
    recon = jax.block_until_ready(recon)

    assert out.shape == (BATCH, 3 * OUT_DIM), out.shape
    assert recon.shape == (1,), recon.shape
    assert bool(jnp.all(jnp.isfinite(out)))
    print("KERNEL_OK")
</pallas_src>

<mosaic_0001>
module attributes {stable_mosaic.version = 11 : i64} {
  func.func @_fused_embed3_kernel(%arg0: i32, %arg1: i32, %arg2: memref<128x128xbf16, #tpu.memory_space<vmem>>, %arg3: memref<128x128xbf16, #tpu.memory_space<vmem>>, %arg4: memref<128x128xbf16, #tpu.memory_space<vmem>>, %arg5: memref<128x128xbf16, #tpu.memory_space<vmem>>, %arg6: memref<128x128xbf16, #tpu.memory_space<vmem>>, %arg7: memref<128x128xbf16, #tpu.memory_space<vmem>>, %arg8: memref<1x3x128xf32, #tpu.memory_space<vmem>>, %arg9: memref<1x128x128xf32, #tpu.memory_space<vmem>>, %arg10: memref<128x128xbf16, #tpu.memory_space<vmem>>, %arg11: memref<2x128x128xbf16, #tpu.memory_space<vmem>>) attributes {dimension_semantics = [#tpu.dimension_semantics<arbitrary>, #tpu.dimension_semantics<arbitrary>], iteration_bounds = array<i64: 3, 1>, scalar_prefetch = 0 : i64, scratch_operands = 2 : i64, tpu.core_type = #tpu.core_type<tc>, window_params = [{pipeline_mode = #tpu.pipeline_mode<synchronous>, transform_indices = @transform_0, window_bounds = array<i64: 128, 128>}, {transform_indices = @transform_1, window_bounds = array<i64: 128, 128>}, {pipeline_mode = #tpu.pipeline_mode<synchronous>, transform_indices = @transform_2, window_bounds = array<i64: 128, 128>}, {pipeline_mode = #tpu.pipeline_mode<synchronous>, transform_indices = @transform_3, window_bounds = array<i64: 128, 128>}, {pipeline_mode = #tpu.pipeline_mode<synchronous>, transform_indices = @transform_4, window_bounds = array<i64: 128, 128>}, {pipeline_mode = #tpu.pipeline_mode<synchronous>, transform_indices = @transform_5, window_bounds = array<i64: 128, 128>}, {transform_indices = @transform_6, window_bounds = array<i64: 1, 3, 128>}, {transform_indices = @transform_7, window_bounds = array<i64: 1, 128, 128>}]} {
    %c0 = arith.constant 0 : index
    %c0_0 = arith.constant 0 : index
    %c0_1 = arith.constant 0 : index
    %0 = vector.load %arg8[%c0, %c0_0, %c0_1] : memref<1x3x128xf32, #tpu.memory_space<vmem>>, vector<1x1x128xf32>
    %1 = vector.shape_cast %0 : vector<1x1x128xf32> to vector<1x128xf32>
    %c0_2 = arith.constant 0 : index
    %c1 = arith.constant 1 : index
    %c0_3 = arith.constant 0 : index
    %2 = vector.load %arg8[%c0_2, %c1, %c0_3] : memref<1x3x128xf32, #tpu.memory_space<vmem>>, vector<1x1x128xf32>
    %3 = vector.shape_cast %2 : vector<1x1x128xf32> to vector<1x128xf32>
    %c0_4 = arith.constant 0 : index
    %c2 = arith.constant 2 : index
    %c0_5 = arith.constant 0 : index
    %4 = vector.load %arg8[%c0_4, %c2, %c0_5] : memref<1x3x128xf32, #tpu.memory_space<vmem>>, vector<1x1x128xf32>
    %5 = vector.shape_cast %4 : vector<1x1x128xf32> to vector<1x128xf32>
    %c0_i32 = arith.constant 0 : i32
    %6 = arith.cmpi eq, %arg1, %c0_i32 : i32
    %7 = arith.extui %6 : i1 to i32
    %c0_i32_6 = arith.constant 0 : i32
    %8 = arith.cmpi ne, %7, %c0_i32_6 : i32
    scf.if %8 {
      %c0_i32_23 = arith.constant 0 : i32
      %46 = arith.cmpi eq, %arg0, %c0_i32_23 : i32
      %47 = arith.extui %46 : i1 to i32
      %c0_i32_24 = arith.constant 0 : i32
      %48 = arith.cmpi ne, %47, %c0_i32_24 : i32
      scf.if %48 {
        %c0_28 = arith.constant 0 : index
        %c0_29 = arith.constant 0 : index
        %55 = vector.load %arg2[%c0_28, %c0_29] : memref<128x128xbf16, #tpu.memory_space<vmem>>, vector<128x128xbf16>
        %c0_30 = arith.constant 0 : index
        %c0_31 = arith.constant 0 : index
        %56 = vector.load %arg4[%c0_30, %c0_31] : memref<128x128xbf16, #tpu.memory_space<vmem>>, vector<128x128xbf16>
        %cst_32 = arith.constant dense<0.000000e+00> : vector<128x128xf32>
        %57 = tpu.matmul %55, %56, %cst_32 {dimension_numbers = #tpu.dot_dimension_numbers<[1], [0], [0], [1], [0, 0, 1, 1], [], []>} : vector<128x128xbf16>, vector<128x128xbf16>, vector<128x128xf32> -> vector<128x128xf32>
        %58 = vector.broadcast %1 : vector<1x128xf32> to vector<128x128xf32>
        %59 = arith.addf %57, %58 : vector<128x128xf32>
        %60 = arith.truncf %59 : vector<128x128xf32> to vector<128x128xbf16>
        %c0_33 = arith.constant 0 : index
        %c0_34 = arith.constant 0 : index
        %61 = vector.load %arg10[%c0_33, %c0_34] : memref<128x128xbf16, #tpu.memory_space<vmem>>, vector<128x128xbf16>
        tpu.vector_store %arg10[%c0_33, %c0_34], %60 {strides = array<i32>} : memref<128x128xbf16, #tpu.memory_space<vmem>>, vector<128x128xbf16>,
      } else {
      }
      %c1_i32_25 = arith.constant 1 : i32
      %49 = arith.cmpi eq, %arg0, %c1_i32_25 : i32
      %50 = arith.extui %49 : i1 to i32
      %c0_i32_26 = arith.constant 0 : i32
      %51 = arith.cmpi ne, %50, %c0_i32_26 : i32
      scf.if %51 {
        %c0_28 = arith.constant 0 : index
        %c0_29 = arith.constant 0 : index
        %c0_30 = arith.constant 0 : index
        %55 = vector.load %arg11[%c0_28, %c0_29, %c0_30] : memref<2x128x128xbf16, #tpu.memory_space<vmem>>, vector<1x128x128xbf16>
        %56 = vector.shape_cast %55 : vector<1x128x128xbf16> to vector<128x128xbf16>
        %c0_31 = arith.constant 0 : index
        %c0_32 = arith.constant 0 : index
        %57 = vector.load %arg5[%c0_31, %c0_32] : memref<128x128xbf16, #tpu.memory_space<vmem>>, vector<128x128xbf16>
        %cst_33 = arith.constant dense<0.000000e+00> : vector<128x128xf32>
        %58 = tpu.matmul %56, %57, %cst_33 {dimension_numbers = #tpu.dot_dimension_numbers<[1], [0], [0], [1], [0, 0, 1, 1], [], []>} : vector<128x128xbf16>, vector<128x128xbf16>, vector<128x128xf32> -> vector<128x128xf32>
        %59 = vector.broadcast %1 : vector<1x128xf32> to vector<128x128xf32>
        %60 = arith.addf %58, %59 : vector<128x128xf32>
        %61 = arith.truncf %60 : vector<128x128xf32> to vector<128x128xbf16>
        %c0_34 = arith.constant 0 : index
        %c0_35 = arith.constant 0 : index
        %62 = vector.load %arg10[%c0_34, %c0_35] : memref<128x128xbf16, #tpu.memory_space<vmem>>, vector<128x128xbf16>
        tpu.vector_store %arg10[%c0_34, %c0_35], %61 {strides = array<i32>} : memref<128x128xbf16, #tpu.memory_space<vmem>>, vector<128x128xbf16>,
      } else {
      }
      %c2_i32 = arith.constant 2 : i32
      %52 = arith.cmpi eq, %arg0, %c2_i32 : i32
      %53 = arith.extui %52 : i1 to i32
      %c0_i32_27 = arith.constant 0 : i32
      %54 = arith.cmpi ne, %53, %c0_i32_27 : i32
      scf.if %54 {
        %c0_28 = arith.constant 0 : index
        %c0_29 = arith.constant 0 : index
        %c0_30 = arith.constant 0 : index
        %55 = vector.load %arg11[%c0_28, %c0_29, %c0_30] : memref<2x128x128xbf16, #tpu.memory_space<vmem>>, vector<1x128x128xbf16>
        %56 = vector.shape_cast %55 : vector<1x128x128xbf16> to vector<128x128xbf16>
        %c0_31 = arith.constant 0 : index
        %c0_32 = arith.constant 0 : index
        %57 = vector.load %arg6[%c0_31, %c0_32] : memref<128x128xbf16, #tpu.memory_space<vmem>>, vector<128x128xbf16>
        %cst_33 = arith.constant dense<0.000000e+00> : vector<128x128xf32>
        %58 = tpu.matmul %56, %57, %cst_33 {dimension_numbers = #tpu.dot_dimension_numbers<[1], [0], [0], [1], [0, 0, 1, 1], [], []>} : vector<128x128xbf16>, vector<128x128xbf16>, vector<128x128xf32> -> vector<128x128xf32>
        %c1_34 = arith.constant 1 : index
        %c0_35 = arith.constant 0 : index
        %c0_36 = arith.constant 0 : index
        %59 = vector.load %arg11[%c1_34, %c0_35, %c0_36] : memref<2x128x128xbf16, #tpu.memory_space<vmem>>, vector<1x128x128xbf16>
        %60 = vector.shape_cast %59 : vector<1x128x128xbf16> to vector<128x128xbf16>
        %c0_37 = arith.constant 0 : index
        %c0_38 = arith.constant 0 : index
        %61 = vector.load %arg7[%c0_37, %c0_38] : memref<128x128xbf16, #tpu.memory_space<vmem>>, vector<128x128xbf16>
        %cst_39 = arith.constant dense<0.000000e+00> : vector<128x128xf32>
        %62 = tpu.matmul %60, %61, %cst_39 {dimension_numbers = #tpu.dot_dimension_numbers<[1], [0], [0], [1], [0, 0, 1, 1], [], []>} : vector<128x128xbf16>, vector<128x128xbf16>, vector<128x128xf32> -> vector<128x128xf32>
        %63 = arith.addf %58, %62 : vector<128x128xf32>
        %64 = vector.broadcast %1 : vector<1x128xf32> to vector<128x128xf32>
        %65 = arith.addf %63, %64 : vector<128x128xf32>
        %66 = arith.truncf %65 : vector<128x128xf32> to vector<128x128xbf16>
        %c0_40 = arith.constant 0 : index
        %c0_41 = arith.constant 0 : index
        %67 = vector.load %arg10[%c0_40, %c0_41] : memref<128x128xbf16, #tpu.memory_space<vmem>>, vector<128x128xbf16>
        tpu.vector_store %arg10[%c0_40, %c0_41], %66 {strides = array<i32>} : memref<128x128xbf16, #tpu.memory_space<vmem>>, vector<128x128xbf16>,
      } else {
      }
    } else {
    }
    %c0_7 = arith.constant 0 : index
    %c0_8 = arith.constant 0 : index
    %9 = vector.load %arg3[%c0_7, %c0_8] : memref<128x128xbf16, #tpu.memory_space<vmem>>, vector<128x128xbf16>
    %c0_9 = arith.constant 0 : index
    %c0_10 = arith.constant 0 : index
    %10 = vector.load %arg10[%c0_9, %c0_10] : memref<128x128xbf16, #tpu.memory_space<vmem>>, vector<128x128xbf16>
    %cst = arith.constant dense<0.000000e+00> : vector<128x128xf32>
    %11 = tpu.matmul %9, %10, %cst {dimension_numbers = #tpu.dot_dimension_numbers<[1], [0], [0], [1], [0, 0, 1, 1], [], []>} : vector<128x128xbf16>, vector<128x128xbf16>, vector<128x128xf32> -> vector<128x128xf32>
    %cst_11 = arith.constant 0.000000e+00 : f32
    %12 = vector.broadcast %cst_11 : f32 to vector<128x128xf32>
    %13 = arith.maximumf %11, %12 : vector<128x128xf32>
    %cst_12 = arith.constant dense<0.000000e+00> : vector<128xf32>
    %14 = vector.multi_reduction <add>, %13, %cst_12 [1] : vector<128x128xf32> to vector<128xf32>
    %15 = vector.shape_cast %14 : vector<128xf32> to vector<128x1xf32>
    %cst_13 = arith.constant 1.280000e+02 : f32
    %16 = vector.broadcast %cst_13 : f32 to vector<128x1xf32>
    %17 = arith.divf %15, %16 : vector<128x1xf32>
    %18 = vector.broadcast %17 : vector<128x1xf32> to vector<128x128xf32>
    %19 = arith.subf %13, %18 : vector<128x128xf32>
    %20 = arith.mulf %19, %19 : vector<128x128xf32>
    %cst_14 = arith.constant dense<0.000000e+00> : vector<128xf32>
    %21 = vector.multi_reduction <add>, %20, %cst_14 [1] : vector<128x128xf32> to vector<128xf32>
    %22 = vector.shape_cast %21 : vector<128xf32> to vector<128x1xf32>
    %cst_15 = arith.constant 1.280000e+02 : f32
    %23 = vector.broadcast %cst_15 : f32 to vector<128x1xf32>
    %24 = arith.divf %22, %23 : vector<128x1xf32>
    %cst_16 = arith.constant 9.99999974E-6 : f32
    %25 = vector.broadcast %cst_16 : f32 to vector<128x1xf32>
    %26 = arith.addf %24, %25 : vector<128x1xf32>
    %27 = math.rsqrt %26 : vector<128x1xf32>
    %28 = vector.broadcast %27 : vector<128x1xf32> to vector<128x128xf32>
    %29 = arith.mulf %19, %28 : vector<128x128xf32>
    %30 = vector.broadcast %3 : vector<1x128xf32> to vector<128x128xf32>
    %31 = arith.mulf %29, %30 : vector<128x128xf32>
    %32 = vector.broadcast %5 : vector<1x128xf32> to vector<128x128xf32>
    %33 = arith.addf %31, %32 : vector<128x128xf32>
    %c0_17 = arith.constant 0 : index
    %c0_18 = arith.constant 0 : index
    %c0_19 = arith.constant 0 : index
    %34 = vector.load %arg9[%c0_17, %c0_18, %c0_19] : memref<1x128x128xf32, #tpu.memory_space<vmem>>, vector<1x128x128xf32>
    %35 = vector.shape_cast %34 : vector<1x128x128xf32> to vector<128x128xf32>
    %36 = vector.shape_cast %33 : vector<128x128xf32> to vector<1x128x128xf32>
    tpu.vector_store %arg9[%c0_17, %c0_18, %c0_19], %36 {strides = array<i32>} : memref<1x128x128xf32, #tpu.memory_space<vmem>>, vector<1x128x128xf32>,
    %c128_i32 = arith.constant 128 : i32
    %37 = arith.muli %arg1, %c128_i32 : i32
    %38 = tpu.assume_multiple %37, 128 : i32
    %39 = arith.truncf %33 : vector<128x128xf32> to vector<128x128xbf16>
    %c0_i32_20 = arith.constant 0 : i32
    %40 = arith.cmpi eq, %arg0, %c0_i32_20 : i32
    %41 = arith.extui %40 : i1 to i32
    %c0_i32_21 = arith.constant 0 : i32
    %42 = arith.cmpi ne, %41, %c0_i32_21 : i32
    scf.if %42 {
      %c0_23 = arith.constant 0 : index
      %46 = arith.index_cast %38 : i32 to index
      %c0_24 = arith.constant 0 : index
      %47 = vector.load %arg11[%c0_23, %46, %c0_24] : memref<2x128x128xbf16, #tpu.memory_space<vmem>>, vector<1x128x128xbf16>
      %48 = vector.shape_cast %47 : vector<1x128x128xbf16> to vector<128x128xbf16>
      %49 = vector.shape_cast %39 : vector<128x128xbf16> to vector<1x128x128xbf16>
      tpu.vector_store %arg11[%c0_23, %46, %c0_24], %49 {strides = array<i32>} : memref<2x128x128xbf16, #tpu.memory_space<vmem>>, vector<1x128x128xbf16>,
    } else {
    }
    %c1_i32 = arith.constant 1 : i32
    %43 = arith.cmpi eq, %arg0, %c1_i32 : i32
    %44 = arith.extui %43 : i1 to i32
    %c0_i32_22 = arith.constant 0 : i32
    %45 = arith.cmpi ne, %44, %c0_i32_22 : i32
    scf.if %45 {
      %c1_23 = arith.constant 1 : index
      %46 = arith.index_cast %38 : i32 to index
      %c0_24 = arith.constant 0 : index
      %47 = vector.load %arg11[%c1_23, %46, %c0_24] : memref<2x128x128xbf16, #tpu.memory_space<vmem>>, vector<1x128x128xbf16>
      %48 = vector.shape_cast %47 : vector<1x128x128xbf16> to vector<128x128xbf16>
      %49 = vector.shape_cast %39 : vector<128x128xbf16> to vector<1x128x128xbf16>
      tpu.vector_store %arg11[%c1_23, %46, %c0_24], %49 {strides = array<i32>} : memref<2x128x128xbf16, #tpu.memory_space<vmem>>, vector<1x128x128xbf16>,
    } else {
    }
    return
  }
  func.func @transform_0(%arg0: i32, %arg1: i32) -> (i32, i32) {
    %c0_i32 = arith.constant 0 : i32
    %c0_i32_0 = arith.constant 0 : i32
    %c0_i32_1 = arith.constant 0 : i32
    return %c0_i32, %c0_i32_0 : i32, i32
  }
  func.func @transform_1(%arg0: i32, %arg1: i32) -> (i32, i32) {
    %c0_i32 = arith.constant 0 : i32
    %c0_i32_0 = arith.constant 0 : i32
    return %arg1, %c0_i32 : i32, i32
  }
  func.func @transform_2(%arg0: i32, %arg1: i32) -> (i32, i32) {
    %c0_i32 = arith.constant 0 : i32
    %c0_i32_0 = arith.constant 0 : i32
    %c0_i32_1 = arith.constant 0 : i32
    return %c0_i32, %c0_i32_0 : i32, i32
  }
  func.func @transform_3(%arg0: i32, %arg1: i32) -> (i32, i32) {
    %c0_i32 = arith.constant 0 : i32
    %c0_i32_0 = arith.constant 0 : i32
    %c0_i32_1 = arith.constant 0 : i32
    return %c0_i32, %c0_i32_0 : i32, i32
  }
  func.func @transform_4(%arg0: i32, %arg1: i32) -> (i32, i32) {
    %c0_i32 = arith.constant 0 : i32
    %c0_i32_0 = arith.constant 0 : i32
    %c0_i32_1 = arith.constant 0 : i32
    return %c0_i32, %c0_i32_0 : i32, i32
  }
  func.func @transform_5(%arg0: i32, %arg1: i32) -> (i32, i32) {
    %c0_i32 = arith.constant 0 : i32
    %c0_i32_0 = arith.constant 0 : i32
    %c0_i32_1 = arith.constant 0 : i32
    return %c0_i32, %c0_i32_0 : i32, i32
  }
  func.func @transform_6(%arg0: i32, %arg1: i32) -> (i32, i32, i32) {
    %c0_i32 = arith.constant 0 : i32
    %c0_i32_0 = arith.constant 0 : i32
    %c0_i32_1 = arith.constant 0 : i32
    return %arg0, %c0_i32, %c0_i32_0 : i32, i32, i32
  }
  func.func @transform_7(%arg0: i32, %arg1: i32) -> (i32, i32, i32) {
    %c0_i32 = arith.constant 0 : i32
    %c0_i32_0 = arith.constant 0 : i32
    return %arg0, %arg1, %c0_i32 : i32, i32, i32
  }
}

</mosaic_0001>

<llo_original>
// kernel: tpu_custom_call.1
$region0: #{tpu_custom_call.1}
  #allocation0 [shape = 'u32[]', space=smem, size = 0x4, offset = 0x4, fixed_abs, tag = 'smem constant byte address 0x4 - core index']
  #allocation1 [shape = 'u32[144,128]{1,0:T(1,128)}', space=vmem, size = 0x12000, scoped, tag = 'internal scratch']
  #allocation2 [shape = 'bf16[128,128]{1,0:T(8,128)(2,1)}', space=vmem, size = 0x8000, scoped, tag = 'scratch operand']
  #allocation3 [shape = 'bf16[2,128,128]{2,1,0:T(8,128)(2,1)}', space=vmem, size = 0x10000, scoped, tag = 'scratch operand']
  %s0 = inlined_call_operand.hbm [shape: bf16[128,128], index: 0, kind: input, shape index: {}]
  %s1 = inlined_call_operand.hbm [shape: bf16[128,128], index: 1, kind: input, shape index: {}]
  %s2 = inlined_call_operand.hbm [shape: bf16[128,128], index: 2, kind: input, shape index: {}]
  %s3 = inlined_call_operand.hbm [shape: bf16[128,128], index: 3, kind: input, shape index: {}]
  %s4 = inlined_call_operand.hbm [shape: bf16[128,128], index: 4, kind: input, shape index: {}]
  %s5 = inlined_call_operand.hbm [shape: bf16[128,128], index: 5, kind: input, shape index: {}]
  %s6 = inlined_call_operand.hbm [shape: f32[3,3,128], index: 6, kind: input, shape index: {}]
  %s7 = inlined_call_operand.hbm [shape: f32[3,128,128], index: 7, kind: output, shape index: {}]
  %s8 = sld [smem:[#allocation0]]
  $region113: #{tpu_custom_call.1} parent=0
    _
  %s10 = ssub.s32 1, %s8
  %s11 = scalar_select 0, %s10, %s8
  $region1: #{tpu_custom_call.1} parent=0
    #allocation4 [shape = 'u8[32768]{0}', space=vmem, size = 0x8000, scoped, tag = 'input window, operand 0, single buffered']
    #allocation5 [shape = 's32[2]{0}', space=sflag, size = 0x8, scoped, tag = 'scoped memory for tpu_custom_call.1']
    #allocation6 [shape = 's32[2]{0}', space=sflag, size = 0x8, scoped, tag = 'scoped memory for tpu_custom_call.1']
    #allocation7 [shape = 'u8[32768]{0}', space=vmem, size = 0x8000, scoped, tag = 'input window, operand 1, single buffered']
    #allocation8 [shape = 's32[1]{0}', space=sflag, size = 0x4, scoped, tag = 'scoped memory for tpu_custom_call.1']
    #allocation9 [shape = 'u8[32768]{0}', space=vmem, size = 0x8000, scoped, tag = 'input window, operand 2, single buffered']
    #allocation10 [shape = 'u8[32768]{0}', space=vmem, size = 0x8000, scoped, tag = 'input window, operand 3, single buffered']
    #allocation11 [shape = 's32[1]{0}', space=sflag, size = 0x4, scoped, tag = 'scoped memory for tpu_custom_call.1']
    #allocation12 [shape = 'u8[32768]{0}', space=vmem, size = 0x8000, scoped, tag = 'input window, operand 4, single buffered']
    #allocation13 [shape = 'u8[32768]{0}', space=vmem, size = 0x8000, scoped, tag = 'input window, operand 5, single buffered']
    #allocation14 [shape = 's32[1]{0}', space=sflag, size = 0x4, scoped, tag = 'scoped memory for tpu_custom_call.1']
    #allocation15 [shape = 'u8[4096]{0}', space=vmem, size = 0x1000, scoped, tag = 'input window, operand 6']
    #allocation16 [shape = 'u8[131072]{0}', space=vmem, size = 0x20000, scoped, tag = 'output window, operand 0']
    %12 = vsyncpa [#allocation5], 0
    %13 = vsyncpa [#allocation8], 0
    %14 = vsyncpa [#allocation11], 0
    %15 = vsyncpa [#allocation14], 0
    %16 = vsyncpa [#allocation6], 0
    %s17 = scalar_lea.sflag [#allocation6], 1
    %18 = vsyncpa %s17, 0
    loop: start=0, step=1, limit=5
    $region2: #{tpu_custom_call.1} parent=1 // loop_pre_header
      _
    $region3: #{tpu_custom_call.1} parent=1 // loop_header
      %s20 = sphi 0, %s24
      %p21 = scmp.ge.s32.totalorder %s20, 5
      %s27 = sphi 0, %s39
      %s28 = sphi 0, %s35
      %s29 = sphi 0, %s27
      %s30 = sphi 0, %s28
      %s31 = sphi 0, %s29
      %s32 = sphi 0, %s30
      %s40 = sphi 0, %s40
      %s42 = sphi 0, %s40
      %s43 = sphi 0, %s42
      %s57 = sphi 0, %s43
      %s63 = sphi 0, %s65
      %s66 = sphi 0, %s63
      %s67 = sphi 0, %s66
      %s83 = sphi 0, %s67
      %s87 = sphi 0, %s87
      %s89 = sphi 0, %s87
      %s90 = sphi 0, %s89
      %s104 = sphi 0, %s90
      %s108 = sphi 0, %s108
      %s110 = sphi 0, %s108
      %s111 = sphi 0, %s110
      %s125 = sphi 0, %s111
      %s129 = sphi 0, %s129
      %s131 = sphi 0, %s129
      %s132 = sphi 0, %s131
      %s146 = sphi 0, %s132
      %s150 = sphi 0, %s150
      %s152 = sphi 0, %s150
      %s153 = sphi 0, %s152
      %s167 = sphi 0, %s153
      %s173 = sphi 0, %s175
      %s176 = sphi 0, %s173
      %s177 = sphi 0, %s176
      %s193 = sphi 0, %s177
      %s201 = sphi 0, %s203
      %s204 = sphi 0, %s201
      %s205 = sphi 0, %s204
      %s221 = sphi 0, %s205
    $region4: #{tpu_custom_call.1} parent=1 // loop_header_branch
      %23 = sbr.rel (%p21) target = $region8
    $region5: #{tpu_custom_call.1} parent=1 // loop_body
      %s25 = ssub.s32 %s20, 1
      %s26 = ssub.s32 %s20, 2
      %s33 = sadd.s32 1, %s28
      %p34 = scmp.ge.s32.totalorder %s33, 1
      %s35 = scalar_select %p34, 0, %s33
      %s36 = sadd.s32 1, %s27
      %s37 = scalar_select %p34, %s36, %s27
      %p38 = scmp.ge.s32.totalorder %s37, 3
      %s39 = scalar_select %p38, 0, %s37
      %s41 = sadd.s32 %s40, 1
      %p44 = scmp.eq.s32.totalorder %s20, 2
      %p45 = scmp.ne.s32.totalorder %s40, %s42
      %p46 = scmp.eq.s32.totalorder %s20, 0
      %p47 = por %p45, %p46
      %p48 = scmp.ne.s32.totalorder %s40, %s42
      %p49 = scmp.eq.s32.totalorder %s25, 2
      %p50 = por %p48, %p49
      %p51 = scmp.ne.s32.totalorder %s42, %s43
      %p52 = scmp.eq.s32.totalorder %s25, 0
      %p53 = por %p51, %p52
      %p54 = scmp.ne.s32.totalorder %s42, %s43
      %p55 = scmp.eq.s32.totalorder %s26, 2
      %p56 = por %p54, %p55
      %p58 = scmp.ne.s32.totalorder %s43, %s57
      %p59 = scmp.eq.s32.totalorder %s26, 0
      %p60 = por %p58, %p59
      %s61 = ssub.s32 %s28, %s35
      %p62 = scmp.eq.s32.totalorder %s61, 0
      %s64 = sadd.s32 %s63, 1
      %s65 = scalar_select %p62, %s63, %s64
      %p68 = pneg %p62
      %p69 = scmp.eq.s32.totalorder %s20, 2
      %p70 = por %p68, %p69
      %p71 = scmp.ne.s32.totalorder %s63, %s66
      %p72 = scmp.eq.s32.totalorder %s20, 0
      %p73 = por %p71, %p72
      %p74 = scmp.ne.s32.totalorder %s63, %s66
      %p75 = scmp.eq.s32.totalorder %s25, 2
      %p76 = por %p74, %p75
      %p77 = scmp.ne.s32.totalorder %s66, %s67
      %p78 = scmp.eq.s32.totalorder %s25, 0
      %p79 = por %p77, %p78
      %p80 = scmp.ne.s32.totalorder %s66, %s67
      %p81 = scmp.eq.s32.totalorder %s26, 2
      %p82 = por %p80, %p81
      %p84 = scmp.ne.s32.totalorder %s67, %s83
      %p85 = scmp.eq.s32.totalorder %s26, 0
      %p86 = por %p84, %p85
      %s88 = sadd.s32 %s87, 1
      %p91 = scmp.eq.s32.totalorder %s20, 2
      %p92 = scmp.ne.s32.totalorder %s87, %s89
      %p93 = scmp.eq.s32.totalorder %s20, 0
      %p94 = por %p92, %p93
      %p95 = scmp.ne.s32.totalorder %s87, %s89
      %p96 = scmp.eq.s32.totalorder %s25, 2
      %p97 = por %p95, %p96
      %p98 = scmp.ne.s32.totalorder %s89, %s90
      %p99 = scmp.eq.s32.totalorder %s25, 0
      %p100 = por %p98, %p99
      %p101 = scmp.ne.s32.totalorder %s89, %s90
      %p102 = scmp.eq.s32.totalorder %s26, 2
      %p103 = por %p101, %p102
      %p105 = scmp.ne.s32.totalorder %s90, %s104
      %p106 = scmp.eq.s32.totalorder %s26, 0
      %p107 = por %p105, %p106
      %s109 = sadd.s32 %s108, 1
      %p112 = scmp.eq.s32.totalorder %s20, 2
      %p113 = scmp.ne.s32.totalorder %s108, %s110
      %p114 = scmp.eq.s32.totalorder %s20, 0
      %p115 = por %p113, %p114
      %p116 = scmp.ne.s32.totalorder %s108, %s110
      %p117 = scmp.eq.s32.totalorder %s25, 2
      %p118 = por %p116, %p117
      %p119 = scmp.ne.s32.totalorder %s110, %s111
      %p120 = scmp.eq.s32.totalorder %s25, 0
      %p121 = por %p119, %p120
      %p122 = scmp.ne.s32.totalorder %s110, %s111
      %p123 = scmp.eq.s32.totalorder %s26, 2
      %p124 = por %p122, %p123
      %p126 = scmp.ne.s32.totalorder %s111, %s125
      %p127 = scmp.eq.s32.totalorder %s26, 0
      %p128 = por %p126, %p127
      %s130 = sadd.s32 %s129, 1
      %p133 = scmp.eq.s32.totalorder %s20, 2
      %p134 = scmp.ne.s32.totalorder %s129, %s131
      %p135 = scmp.eq.s32.totalorder %s20, 0
      %p136 = por %p134, %p135
      %p137 = scmp.ne.s32.totalorder %s129, %s131
      %p138 = scmp.eq.s32.totalorder %s25, 2
      %p139 = por %p137, %p138
      %p140 = scmp.ne.s32.totalorder %s131, %s132
      %p141 = scmp.eq.s32.totalorder %s25, 0
      %p142 = por %p140, %p141
      %p143 = scmp.ne.s32.totalorder %s131, %s132
      %p144 = scmp.eq.s32.totalorder %s26, 2
      %p145 = por %p143, %p144
      %p147 = scmp.ne.s32.totalorder %s132, %s146
      %p148 = scmp.eq.s32.totalorder %s26, 0
      %p149 = por %p147, %p148
      %s151 = sadd.s32 %s150, 1
      %p154 = scmp.eq.s32.totalorder %s20, 2
      %p155 = scmp.ne.s32.totalorder %s150, %s152
      %p156 = scmp.eq.s32.totalorder %s20, 0
      %p157 = por %p155, %p156
      %p158 = scmp.ne.s32.totalorder %s150, %s152
      %p159 = scmp.eq.s32.totalorder %s25, 2
      %p160 = por %p158, %p159
      %p161 = scmp.ne.s32.totalorder %s152, %s153
      %p162 = scmp.eq.s32.totalorder %s25, 0
      %p163 = por %p161, %p162
      %p164 = scmp.ne.s32.totalorder %s152, %s153
      %p165 = scmp.eq.s32.totalorder %s26, 2
      %p166 = por %p164, %p165
      %p168 = scmp.ne.s32.totalorder %s153, %s167
      %p169 = scmp.eq.s32.totalorder %s26, 0
      %p170 = por %p168, %p169
      %s171 = ssub.s32 %s27, %s39
      %p172 = scmp.eq.s32.totalorder %s171, 0
      %s174 = sadd.s32 %s173, 1
      %s175 = scalar_select %p172, %s173, %s174
      %p178 = pneg %p172
      %p179 = scmp.eq.s32.totalorder %s20, 2
      %p180 = por %p178, %p179
      %p181 = scmp.ne.s32.totalorder %s173, %s176
      %p182 = scmp.eq.s32.totalorder %s20, 0
      %p183 = por %p181, %p182
      %p184 = scmp.ne.s32.totalorder %s173, %s176
      %p185 = scmp.eq.s32.totalorder %s25, 2
      %p186 = por %p184, %p185
      %p187 = scmp.ne.s32.totalorder %s176, %s177
      %p188 = scmp.eq.s32.totalorder %s25, 0
      %p189 = por %p187, %p188
      %p190 = scmp.ne.s32.totalorder %s176, %s177
      %p191 = scmp.eq.s32.totalorder %s26, 2
      %p192 = por %p190, %p191
      %p194 = scmp.ne.s32.totalorder %s177, %s193
      %p195 = scmp.eq.s32.totalorder %s26, 0
      %p196 = por %p194, %p195
      %s197 = ssub.s32 %s27, %s39
      %s198 = ssub.s32 %s28, %s35
      %s199 = sor.u32 %s197, %s198
      %p200 = scmp.eq.s32.totalorder %s199, 0
      %s202 = sadd.s32 %s201, 1
      %s203 = scalar_select %p200, %s201, %s202
      %p206 = pneg %p200
      %p207 = scmp.eq.s32.totalorder %s20, 2
      %p208 = por %p206, %p207
      %p209 = scmp.ne.s32.totalorder %s201, %s204
      %p210 = scmp.eq.s32.totalorder %s20, 0
      %p211 = por %p209, %p210
      %p212 = scmp.ne.s32.totalorder %s201, %s204
      %p213 = scmp.eq.s32.totalorder %s25, 2
      %p214 = por %p212, %p213
      %p215 = scmp.ne.s32.totalorder %s204, %s205
      %p216 = scmp.eq.s32.totalorder %s25, 0
      %p217 = por %p215, %p216
      %p218 = scmp.ne.s32.totalorder %s204, %s205
      %p219 = scmp.eq.s32.totalorder %s26, 2
      %p220 = por %p218, %p219
      %p222 = scmp.ne.s32.totalorder %s205, %s221
      %p223 = scmp.eq.s32.totalorder %s26, 0
      %p224 = por %p222, %p223
      %p225 = scmp.le.s32.totalorder 1, %s20
      %p226 = scmp.lt.s32.totalorder %s20, 4
      %p227 = pnand %p225, %p226
      %p228 = pneg %p227
      // Predicated region
      $region9: #{tpu_custom_call.1} parent=5 // pred_check
        _
      $region10: #{tpu_custom_call.1} parent=5 // pred_check_branch
        %230 = sbr.rel (%p227) target = $region12
      $region11: #{tpu_custom_call.1} parent=5 // pred_region
        %s231 = ssub.s32 %s20, 1
        // Predicated region
        $region13: #{tpu_custom_call.1} parent=11 // pred_check
          %p232 = pneg %p53
        $region14: #{tpu_custom_call.1} parent=11 // pred_check_branch
          %234 = sbr.rel (%p232) target = $region16
        $region15: #{tpu_custom_call.1} parent=11 // pred_region
          %s236 = ssub.s32 1024, 1024
          %237 = vsyncadd [#allocation5], %s236
          %s238 = sshll.u32 [#allocation4], 4
          %s239 = int_to_ptr.vmem [resolvable:$true] %s238
          %244 = dma.hbm_to_vmem [thread:$0]  %s0, 1024, %s239, [#allocation5], 64, 64, 4
        $region16: #{tpu_custom_call.1} parent=11 // pred_fallthru
          _
        // Predicated region
        $region17: #{tpu_custom_call.1} parent=11 // pred_check
          %p245 = pneg %p79
        $region18: #{tpu_custom_call.1} parent=11 // pred_check_branch
          %247 = sbr.rel (%p245) target = $region20
        $region19: #{tpu_custom_call.1} parent=11 // pred_region
          %s248 = smul.u32 16, %s30
          %s250 = ssub.s32 1024, 1024
          %251 = vsyncadd [#allocation8], %s250
          %s252 = smul.addr %s248, 64
          %s253 = scalar_lea.hbm %s1, %s252
          %s254 = sshll.u32 [#allocation7], 4
          %s255 = int_to_ptr.vmem [resolvable:$true] %s254
          %260 = dma.hbm_to_vmem [thread:$0]  %s253, 1024, %s255, [#allocation8], 64, 64, 4
        $region20: #{tpu_custom_call.1} parent=11 // pred_fallthru
          _
        // Predicated region
        $region21: #{tpu_custom_call.1} parent=11 // pred_check
          %p261 = pneg %p100
        $region22: #{tpu_custom_call.1} parent=11 // pred_check_branch
          %263 = sbr.rel (%p261) target = $region24
        $region23: #{tpu_custom_call.1} parent=11 // pred_region
          %s265 = ssub.s32 1024, 1024
          %266 = vsyncadd [#allocation8], %s265
          %s267 = sshll.u32 [#allocation9], 4
          %s268 = int_to_ptr.vmem [resolvable:$true] %s267
          %273 = dma.hbm_to_vmem [thread:$0]  %s2, 1024, %s268, [#allocation8], 64, 64, 4
        $region24: #{tpu_custom_call.1} parent=11 // pred_fallthru
          _
        // Predicated region
        $region25: #{tpu_custom_call.1} parent=11 // pred_check
          %p274 = pneg %p121
        $region26: #{tpu_custom_call.1} parent=11 // pred_check_branch
          %276 = sbr.rel (%p274) target = $region28
        $region27: #{tpu_custom_call.1} parent=11 // pred_region
          %s278 = ssub.s32 1024, 1024
          %279 = vsyncadd [#allocation11], %s278
          %s280 = sshll.u32 [#allocation10], 4
          %s281 = int_to_ptr.vmem [resolvable:$true] %s280
          %286 = dma.hbm_to_vmem [thread:$0]  %s3, 1024, %s281, [#allocation11], 64, 64, 4
        $region28: #{tpu_custom_call.1} parent=11 // pred_fallthru
          _
        // Predicated region
        $region29: #{tpu_custom_call.1} parent=11 // pred_check
          %p287 = pneg %p142
        $region30: #{tpu_custom_call.1} parent=11 // pred_check_branch
          %289 = sbr.rel (%p287) target = $region32
        $region31: #{tpu_custom_call.1} parent=11 // pred_region
          %s291 = ssub.s32 1024, 1024
          %292 = vsyncadd [#allocation11], %s291
          %s293 = sshll.u32 [#allocation12], 4
          %s294 = int_to_ptr.vmem [resolvable:$true] %s293
          %299 = dma.hbm_to_vmem [thread:$0]  %s4, 1024, %s294, [#allocation11], 64, 64, 4
        $region32: #{tpu_custom_call.1} parent=11 // pred_fallthru
          _
        // Predicated region
        $region33: #{tpu_custom_call.1} parent=11 // pred_check
          %p300 = pneg %p163
        $region34: #{tpu_custom_call.1} parent=11 // pred_check_branch
          %302 = sbr.rel (%p300) target = $region36
        $region35: #{tpu_custom_call.1} parent=11 // pred_region
          %s304 = ssub.s32 1024, 1024
          %305 = vsyncadd [#allocation14], %s304
          %s306 = sshll.u32 [#allocation13], 4
          %s307 = int_to_ptr.vmem [resolvable:$true] %s306
          %312 = dma.hbm_to_vmem [thread:$0]  %s5, 1024, %s307, [#allocation14], 64, 64, 4
        $region36: #{tpu_custom_call.1} parent=11 // pred_fallthru
          _
      $region12: #{tpu_custom_call.1} parent=5 // pred_fallthru
        _
      %p313 = scmp.lt.s32.totalorder %s20, 3
      // Predicated region
      $region37: #{tpu_custom_call.1} parent=5 // pred_check
        %p314 = pneg %p313
      $region38: #{tpu_custom_call.1} parent=5 // pred_check_branch
        %316 = sbr.rel (%p314) target = $region40
      $region39: #{tpu_custom_call.1} parent=5 // pred_region
        // Predicated region
        $region41: #{tpu_custom_call.1} parent=39 // pred_check
          %p317 = pneg %p183
        $region42: #{tpu_custom_call.1} parent=39 // pred_check_branch
          %319 = sbr.rel (%p317) target = $region44
        $region43: #{tpu_custom_call.1} parent=39 // pred_region
          %s320 = sand.u32 %s20, 1
          %s321 = scalar_lea.sflag [#allocation5], %s320
          %s322 = sand.u32 %s173, 1
          %s323 = smul.addr %s322, 4
          %s324 = scalar_lea.vmem [#allocation15], %s323
          %s326 = ssub.s32 64, 64
          %327 = vsyncadd %s321, %s326
          %s328 = smul.addr %s27, 64
          %s329 = scalar_lea.hbm %s6, %s328
          %s331 = sshll.u32 %s324, 4
          %s332 = int_to_ptr.vmem [resolvable:$true] %s331
          %334 = dma.hbm_to_vmem [thread:$0]  %s329, 64, %s332, %s321
        $region44: #{tpu_custom_call.1} parent=39 // pred_fallthru
          _
      $region40: #{tpu_custom_call.1} parent=5 // pred_fallthru
        _
      %p335 = scmp.le.s32.totalorder 1, %s20
      %p336 = scmp.lt.s32.totalorder %s20, 4
      %p337 = pnand %p335, %p336
      %p338 = pneg %p337
      // Predicated region
      $region45: #{tpu_custom_call.1} parent=5 // pred_check
        _
      $region46: #{tpu_custom_call.1} parent=5 // pred_check_branch
        %340 = sbr.rel (%p337) target = $region48
      $region47: #{tpu_custom_call.1} parent=5 // pred_region
        %s341 = ssub.s32 %s20, 1
        // Predicated region
        $region49: #{tpu_custom_call.1} parent=47 // pred_check
          %p342 = pneg %p53
        $region50: #{tpu_custom_call.1} parent=47 // pred_check_branch
          %344 = sbr.rel (%p342) target = $region52
        $region51: #{tpu_custom_call.1} parent=47 // pred_region
          %345 = dma.done [#allocation5], 1024
        $region52: #{tpu_custom_call.1} parent=47 // pred_fallthru
          _
        // Predicated region
        $region53: #{tpu_custom_call.1} parent=47 // pred_check
          %p346 = pneg %p79
        $region54: #{tpu_custom_call.1} parent=47 // pred_check_branch
          %348 = sbr.rel (%p346) target = $region56
        $region55: #{tpu_custom_call.1} parent=47 // pred_region
          %349 = dma.done [#allocation8], 1024
        $region56: #{tpu_custom_call.1} parent=47 // pred_fallthru
          _
        // Predicated region
        $region57: #{tpu_custom_call.1} parent=47 // pred_check
          %p350 = pneg %p100
        $region58: #{tpu_custom_call.1} parent=47 // pred_check_branch
          %352 = sbr.rel (%p350) target = $region60
        $region59: #{tpu_custom_call.1} parent=47 // pred_region
          %353 = dma.done [#allocation8], 1024
        $region60: #{tpu_custom_call.1} parent=47 // pred_fallthru
          _
        // Predicated region
        $region61: #{tpu_custom_call.1} parent=47 // pred_check
          %p354 = pneg %p121
        $region62: #{tpu_custom_call.1} parent=47 // pred_check_branch
          %356 = sbr.rel (%p354) target = $region64
        $region63: #{tpu_custom_call.1} parent=47 // pred_region
          %357 = dma.done [#allocation11], 1024
        $region64: #{tpu_custom_call.1} parent=47 // pred_fallthru
          _
        // Predicated region
        $region65: #{tpu_custom_call.1} parent=47 // pred_check
          %p358 = pneg %p142
        $region66: #{tpu_custom_call.1} parent=47 // pred_check_branch
          %360 = sbr.rel (%p358) target = $region68
        $region67: #{tpu_custom_call.1} parent=47 // pred_region
          %361 = dma.done [#allocation11], 1024
        $region68: #{tpu_custom_call.1} parent=47 // pred_fallthru
          _
        // Predicated region
        $region69: #{tpu_custom_call.1} parent=47 // pred_check
          %p362 = pneg %p163
        $region70: #{tpu_custom_call.1} parent=47 // pred_check_branch
          %364 = sbr.rel (%p362) target = $region72
        $region71: #{tpu_custom_call.1} parent=47 // pred_region
          %365 = dma.done [#allocation14], 1024
        $region72: #{tpu_custom_call.1} parent=47 // pred_fallthru
          _
        %s366 = sand.u32 %s25, 1
        %s367 = scalar_lea.sflag [#allocation5], %s366
        %s368 = sand.u32 %s176, 1
        %s369 = smul.addr %s368, 4
        %s370 = scalar_lea.vmem [#allocation15], %s369
        // Predicated region
        $region73: #{tpu_custom_call.1} parent=47 // pred_check
          %p371 = pneg %p189
        $region74: #{tpu_custom_call.1} parent=47 // pred_check_branch
          %373 = sbr.rel (%p371) target = $region76
        $region75: #{tpu_custom_call.1} parent=47 // pred_region
          %374 = dma.done %s367, 64
        $region76: #{tpu_custom_call.1} parent=47 // pred_fallthru
          _
        %p375 = pneg %p53
        %p376 = pneg %p50
        %p377 = pneg %p79
        %p378 = pneg %p76
        %p379 = pneg %p100
        %p380 = pneg %p97
        %p381 = pneg %p121
        %p382 = pneg %p118
        %p383 = pneg %p142
        %p384 = pneg %p139
        %p385 = pneg %p163
        %p386 = pneg %p160
        %s387 = sand.u32 %s25, 1
        %s388 = scalar_lea.sflag [#allocation5], %s387
        %s389 = sand.u32 %s176, 1
        %s390 = smul.addr %s389, 4
        %s391 = scalar_lea.vmem [#allocation15], %s390
        %p392 = pneg %p189
        %p393 = pneg %p186
        %p394 = pneg %p217
        %p395 = pneg %p214
        %s396 = sand.u32 %s204, 1
        %s397 = scalar_lea.sflag [#allocation6], %s396
        %s398 = sand.u32 %s204, 1
        %s399 = smul.addr %s398, 128
        %s400 = scalar_lea.vmem [#allocation16], %s399
        %s401 = smul.u32 16, %s30
        %s402 = smul.u32 16, %s30
        %v404 = vld [vmem:[%s370] sm:$0x1]
        %v405 = vld [vmem:[%s370 + $0x1] sm:$0x1]
        %v406 = vld [vmem:[%s370 + $0x2] sm:$0x1]
        %p407 = scmp.eq.s32.totalorder %s30, 0
        // Predicated region
        $region77: #{tpu_custom_call.1} parent=47 // pred_check
          %p408 = pneg %p407
        $region78: #{tpu_custom_call.1} parent=47 // pred_check_branch
          %410 = sbr.rel (%p408) target = $region80
        $region79: #{tpu_custom_call.1} parent=47 // pred_region
          %p411 = scmp.eq.s32.totalorder %s29, 0
          // Predicated region
          $region81: #{tpu_custom_call.1} parent=79 // pred_check
            %p412 = pneg %p411
          $region82: #{tpu_custom_call.1} parent=79 // pred_check_branch
            %414 = sbr.rel (%p412) target = $region84
          $region83: #{tpu_custom_call.1} parent=79 // pred_region
            %v415 = vld [vmem:[#allocation4] sm:$0xf]
            %v416 = vld [vmem:[#allocation4 + $0x4] sm:$0xf]
            %v417 = vld [vmem:[#allocation4 + $0x8] sm:$0xf]
            %v418 = vld [vmem:[#allocation4 + $0xc] sm:$0xf]
            %v419 = vld [vmem:[#allocation4 + $0x10] sm:$0xf]
            %v420 = vld [vmem:[#allocation4 + $0x14] sm:$0xf]
            %v421 = vld [vmem:[#allocation4 + $0x18] sm:$0xf]
            %v422 = vld [vmem:[#allocation4 + $0x1c] sm:$0xf]
            %v423 = vld [vmem:[#allocation4 + $0x20] sm:$0xf]
            %v424 = vld [vmem:[#allocation4 + $0x24] sm:$0xf]
            %v425 = vld [vmem:[#allocation4 + $0x28] sm:$0xf]
            %v426 = vld [vmem:[#allocation4 + $0x2c] sm:$0xf]
            %v427 = vld [vmem:[#allocation4 + $0x30] sm:$0xf]
            %v428 = vld [vmem:[#allocation4 + $0x34] sm:$0xf]
            %v429 = vld [vmem:[#allocation4 + $0x38] sm:$0xf]
            %v430 = vld [vmem:[#allocation4 + $0x3c] sm:$0xf]
            %v431 = vld [vmem:[#allocation9] sm:$0xf]
            %v432 = vld [vmem:[#allocation9 + $0x4] sm:$0xf]
            %v433 = vld [vmem:[#allocation9 + $0x8] sm:$0xf]
            %v434 = vld [vmem:[#allocation9 + $0xc] sm:$0xf]
            %v435 = vld [vmem:[#allocation9 + $0x10] sm:$0xf]
            %v436 = vld [vmem:[#allocation9 + $0x14] sm:$0xf]
            %v437 = vld [vmem:[#allocation9 + $0x18] sm:$0xf]
            %v438 = vld [vmem:[#allocation9 + $0x1c] sm:$0xf]
            %v439 = vld [vmem:[#allocation9 + $0x20] sm:$0xf]
            %v440 = vld [vmem:[#allocation9 + $0x24] sm:$0xf]
            %v441 = vld [vmem:[#allocation9 + $0x28] sm:$0xf]
            %v442 = vld [vmem:[#allocation9 + $0x2c] sm:$0xf]
            %v443 = vld [vmem:[#allocation9 + $0x30] sm:$0xf]
            %v444 = vld [vmem:[#allocation9 + $0x34] sm:$0xf]
            %v445 = vld [vmem:[#allocation9 + $0x38] sm:$0xf]
            %v446 = vld [vmem:[#allocation9 + $0x3c] sm:$0xf]
            %v447 = vlaneseq
            %v448 = vshrl.u32 %v447, 7
            %v449 = vsub.s32 0, %v448
            %v450 = vrot.slane %v404, %v449
            %v467 = vunpack.c.l.b16 %v415
            %v468 = vunpack.c.l.b16 %v416
            %v469 = vunpack.c.l.b16 %v417
            %v470 = vunpack.c.l.b16 %v418
            %v471 = vunpack.c.l.b16 %v419
            %v472 = vunpack.c.l.b16 %v420
            %v473 = vunpack.c.l.b16 %v421
            %v474 = vunpack.c.l.b16 %v422
            %v475 = vunpack.c.l.b16 %v423
            %v476 = vunpack.c.l.b16 %v424
            %v477 = vunpack.c.l.b16 %v425
            %v478 = vunpack.c.l.b16 %v426
            %v479 = vunpack.c.l.b16 %v427
            %v480 = vunpack.c.l.b16 %v428
            %v481 = vunpack.c.l.b16 %v429
            %v482 = vunpack.c.l.b16 %v430
            %v483 = vpack.c.b16 %v468, %v467
            %v484 = vpack.c.b16 %v470, %v469
            %v485 = vpack.c.b16 %v472, %v471
            %v486 = vpack.c.b16 %v474, %v473
            %v487 = vpack.c.b16 %v476, %v475
            %v488 = vpack.c.b16 %v478, %v477
            %v489 = vpack.c.b16 %v480, %v479
            %v490 = vpack.c.b16 %v482, %v481
            %v515 = vunpack.c.l.b16 %v431
            %v516 = vunpack.c.l.b16 %v432
            %v517 = vunpack.c.l.b16 %v433
            %v518 = vunpack.c.l.b16 %v434
            %v519 = vunpack.c.l.b16 %v435
            %v520 = vunpack.c.l.b16 %v436
            %v521 = vunpack.c.l.b16 %v437
            %v522 = vunpack.c.l.b16 %v438
            %v523 = vunpack.c.l.b16 %v439
            %v524 = vunpack.c.l.b16 %v440
            %v525 = vunpack.c.l.b16 %v441
            %v526 = vunpack.c.l.b16 %v442
            %v527 = vunpack.c.l.b16 %v443
            %v528 = vunpack.c.l.b16 %v444
            %v529 = vunpack.c.l.b16 %v445
            %v530 = vunpack.c.l.b16 %v446
            %v531 = vpack.c.b16 %v516, %v515
            %v532 = vpack.c.b16 %v518, %v517
            %v533 = vpack.c.b16 %v520, %v519
            %v534 = vpack.c.b16 %v522, %v521
            %v535 = vpack.c.b16 %v524, %v523
            %v536 = vpack.c.b16 %v526, %v525
            %v537 = vpack.c.b16 %v528, %v527
            %v538 = vpack.c.b16 %v530, %v529
            %547 = vmatprep.subr.bf16.mxu0 0
            %548 = vmatpush1.bf16.msra.mxu0 %v538
            %549 = vmatprep.subr.bf16.mxu0 0
            %550 = vmatpush1.bf16.msra.mxu0 %v537
            %551 = vmatprep.subr.bf16.mxu0 0
            %552 = vmatpush1.bf16.msra.mxu0 %v536
            %553 = vmatprep.subr.bf16.mxu0 0
            %554 = vmatpush1.bf16.msra.mxu0 %v535
            %555 = vmatprep.subr.bf16.mxu0 0
            %556 = vmatpush1.bf16.msra.mxu0 %v534
            %557 = vmatprep.subr.bf16.mxu0 0
            %558 = vmatpush1.bf16.msra.mxu0 %v533
            %559 = vmatprep.subr.bf16.mxu0 0
            %560 = vmatpush1.bf16.msra.mxu0 %v532
            %561 = vmatprep.subr.bf16.mxu0 0
            %562 = vmatpush1.bf16.msra.mxu0 %v531
            %563 = vmatprep.subr.bf16.mxu0 0
            %564 = vmatpush2.bf16.msra.mxu0 0
            %565 = vmatprep.subr.bf16.mxu0 0
            %566 = vmatpush2.bf16.msra.mxu0 0
            %567 = vmatprep.subr.bf16.mxu0 0
            %568 = vmatpush2.bf16.msra.mxu0 0
            %569 = vmatprep.subr.bf16.mxu0 0
            %570 = vmatpush2.bf16.msra.mxu0 0
            %571 = vmatprep.subr.bf16.mxu0 0
            %572 = vmatpush2.bf16.msra.mxu0 0
            %573 = vmatprep.subr.bf16.mxu0 0
            %574 = vmatpush2.bf16.msra.mxu0 0
            %575 = vmatprep.subr.bf16.mxu0 0
            %576 = vmatpush2.bf16.msra.mxu0 0
            %577 = vmatprep.subr.bf16.mxu0 0
            %578 = vmatpush2.bf16.msra.mxu0 0
            %579 = vmatprep.mubr.bf16.mxu0 0
            %580 = vmatmul.mubr.bf16.gmra.mxu0 %v483
            %v581 = vpop.f32.mrf.mxu0
            %v582 = vadd.f32 %v450, %v581
            %v583 = vpop.f32.mrf.mxu0
            %v584 = vpop.f32.mrf.mxu0
            %v585 = vadd.f32 %v450, %v584
            %v586 = vpop.f32.mrf.mxu0
            %587 = vmatprep.mubr.bf16.mxu0 0
            %588 = vmatmul.mubr.bf16.gmra.mxu0 %v484
            %v589 = vpop.f32.mrf.mxu0
            %v590 = vadd.f32 %v450, %v589
            %v591 = vpop.f32.mrf.mxu0
            %v592 = vpop.f32.mrf.mxu0
            %v593 = vadd.f32 %v450, %v592
            %v594 = vpop.f32.mrf.mxu0
            %595 = vmatprep.mubr.bf16.mxu0 0
            %596 = vmatmul.mubr.bf16.gmra.mxu0 %v485
            %v597 = vpop.f32.mrf.mxu0
            %v598 = vadd.f32 %v450, %v597
            %v599 = vpop.f32.mrf.mxu0
            %v600 = vpop.f32.mrf.mxu0
            %v601 = vadd.f32 %v450, %v600
            %v602 = vpop.f32.mrf.mxu0
            %603 = vmatprep.mubr.bf16.mxu0 0
            %604 = vmatmul.mubr.bf16.gmra.mxu0 %v486
            %v605 = vpop.f32.mrf.mxu0
            %v606 = vadd.f32 %v450, %v605
            %v607 = vpop.f32.mrf.mxu0
            %v608 = vpop.f32.mrf.mxu0
            %v609 = vadd.f32 %v450, %v608
            %v610 = vpop.f32.mrf.mxu0
            %611 = vmatprep.mubr.bf16.mxu0 0
            %612 = vmatmul.mubr.bf16.gmra.mxu0 %v487
            %v613 = vpop.f32.mrf.mxu0
            %v614 = vadd.f32 %v450, %v613
            %v615 = vpop.f32.mrf.mxu0
            %v616 = vpop.f32.mrf.mxu0
            %v617 = vadd.f32 %v450, %v616
            %v618 = vpop.f32.mrf.mxu0
            %619 = vmatprep.mubr.bf16.mxu0 0
            %620 = vmatmul.mubr.bf16.gmra.mxu0 %v488
            %v621 = vpop.f32.mrf.mxu0
            %v622 = vadd.f32 %v450, %v621
            %v623 = vpop.f32.mrf.mxu0
            %v624 = vpop.f32.mrf.mxu0
            %v625 = vadd.f32 %v450, %v624
            %v626 = vpop.f32.mrf.mxu0
            %627 = vmatprep.mubr.bf16.mxu0 0
            %628 = vmatmul.mubr.bf16.gmra.mxu0 %v489
            %v629 = vpop.f32.mrf.mxu0
            %v630 = vadd.f32 %v450, %v629
            %v631 = vpop.f32.mrf.mxu0
            %v632 = vpop.f32.mrf.mxu0
            %v633 = vadd.f32 %v450, %v632
            %v634 = vpop.f32.mrf.mxu0
            %635 = vmatprep.mubr.bf16.mxu0 0
            %636 = vmatmul.mubr.bf16.gmra.mxu0 %v490
            %v637 = vpop.f32.mrf.mxu0
            %v638 = vadd.f32 %v450, %v637
            %v639 = vpop.f32.mrf.mxu0
            %v640 = vpop.f32.mrf.mxu0
            %v641 = vadd.f32 %v450, %v640
            %v642 = vpop.f32.mrf.mxu0
            %643 = vdwg.mxu0
            %v644 = vpack.c.bf16 %v585, %v582
            %v645 = vpack.c.bf16 %v593, %v590
            %v646 = vpack.c.bf16 %v601, %v598
            %v647 = vpack.c.bf16 %v609, %v606
            %v648 = vpack.c.bf16 %v617, %v614
            %v649 = vpack.c.bf16 %v625, %v622
            %v650 = vpack.c.bf16 %v633, %v630
            %v651 = vpack.c.bf16 %v641, %v638
            %v660 = vunpack.c.l.b16 %v644
            %v661 = vunpack.c.h.b16 %v644
            %v662 = vunpack.c.l.b16 %v645
            %v663 = vunpack.c.h.b16 %v645
            %v664 = vunpack.c.l.b16 %v646
            %v665 = vunpack.c.h.b16 %v646
            %v666 = vunpack.c.l.b16 %v647
            %v667 = vunpack.c.h.b16 %v647
            %v668 = vunpack.c.l.b16 %v648
            %v669 = vunpack.c.h.b16 %v648
            %v670 = vunpack.c.l.b16 %v649
            %v671 = vunpack.c.h.b16 %v649
            %v672 = vunpack.c.l.b16 %v650
            %v673 = vunpack.c.h.b16 %v650
            %v674 = vunpack.c.l.b16 %v651
            %v675 = vunpack.c.h.b16 %v651
            %v676 = vpack.c.b16 %v660, %v660
            %v677 = vpack.c.b16 %v661, %v661
            %v678 = vpack.c.b16 %v662, %v662
            %v679 = vpack.c.b16 %v663, %v663
            %v680 = vpack.c.b16 %v664, %v664
            %v681 = vpack.c.b16 %v665, %v665
            %v682 = vpack.c.b16 %v666, %v666
            %v683 = vpack.c.b16 %v667, %v667
            %v684 = vpack.c.b16 %v668, %v668
            %v685 = vpack.c.b16 %v669, %v669
            %v686 = vpack.c.b16 %v670, %v670
            %v687 = vpack.c.b16 %v671, %v671
            %v688 = vpack.c.b16 %v672, %v672
            %v689 = vpack.c.b16 %v673, %v673
            %v690 = vpack.c.b16 %v674, %v674
            %v691 = vpack.c.b16 %v675, %v675
            %708 = vst [vmem:[#allocation2] sm:$0xf] %v676
            %709 = vst [vmem:[#allocation2 + $0x4] sm:$0xf] %v677
            %710 = vst [vmem:[#allocation2 + $0x8] sm:$0xf] %v678
            %711 = vst [vmem:[#allocation2 + $0xc] sm:$0xf] %v679
            %712 = vst [vmem:[#allocation2 + $0x10] sm:$0xf] %v680
            %713 = vst [vmem:[#allocation2 + $0x14] sm:$0xf] %v681
            %714 = vst [vmem:[#allocation2 + $0x18] sm:$0xf] %v682
            %715 = vst [vmem:[#allocation2 + $0x1c] sm:$0xf] %v683
            %716 = vst [vmem:[#allocation2 + $0x20] sm:$0xf] %v684
            %717 = vst [vmem:[#allocation2 + $0x24] sm:$0xf] %v685
            %718 = vst [vmem:[#allocation2 + $0x28] sm:$0xf] %v686
            %719 = vst [vmem:[#allocation2 + $0x2c] sm:$0xf] %v687
            %720 = vst [vmem:[#allocation2 + $0x30] sm:$0xf] %v688
            %721 = vst [vmem:[#allocation2 + $0x34] sm:$0xf] %v689
            %722 = vst [vmem:[#allocation2 + $0x38] sm:$0xf] %v690
            %723 = vst [vmem:[#allocation2 + $0x3c] sm:$0xf] %v691
          $region84: #{tpu_custom_call.1} parent=79 // pred_fallthru
            _
          %p724 = scmp.eq.s32.totalorder %s29, 1
          // Predicated region
          $region85: #{tpu_custom_call.1} parent=79 // pred_check
            %p725 = pneg %p724
          $region86: #{tpu_custom_call.1} parent=79 // pred_check_branch
            %727 = sbr.rel (%p725) target = $region88
          $region87: #{tpu_custom_call.1} parent=79 // pred_region
            %v728 = vld [vmem:[#allocation3] sm:$0xf]
            %v729 = vld [vmem:[#allocation3 + $0x4] sm:$0xf]
            %v730 = vld [vmem:[#allocation3 + $0x8] sm:$0xf]
            %v731 = vld [vmem:[#allocation3 + $0xc] sm:$0xf]
            %v732 = vld [vmem:[#allocation3 + $0x10] sm:$0xf]
            %v733 = vld [vmem:[#allocation3 + $0x14] sm:$0xf]
            %v734 = vld [vmem:[#allocation3 + $0x18] sm:$0xf]
            %v735 = vld [vmem:[#allocation3 + $0x1c] sm:$0xf]
            %v736 = vld [vmem:[#allocation3 + $0x20] sm:$0xf]
            %v737 = vld [vmem:[#allocation3 + $0x24] sm:$0xf]
            %v738 = vld [vmem:[#allocation3 + $0x28] sm:$0xf]
            %v739 = vld [vmem:[#allocation3 + $0x2c] sm:$0xf]
            %v740 = vld [vmem:[#allocation3 + $0x30] sm:$0xf]
            %v741 = vld [vmem:[#allocation3 + $0x34] sm:$0xf]
            %v742 = vld [vmem:[#allocation3 + $0x38] sm:$0xf]
            %v743 = vld [vmem:[#allocation3 + $0x3c] sm:$0xf]
            %v744 = vld [vmem:[#allocation10] sm:$0xf]
            %v745 = vld [vmem:[#allocation10 + $0x4] sm:$0xf]
            %v746 = vld [vmem:[#allocation10 + $0x8] sm:$0xf]
            %v747 = vld [vmem:[#allocation10 + $0xc] sm:$0xf]
            %v748 = vld [vmem:[#allocation10 + $0x10] sm:$0xf]
            %v749 = vld [vmem:[#allocation10 + $0x14] sm:$0xf]
            %v750 = vld [vmem:[#allocation10 + $0x18] sm:$0xf]
            %v751 = vld [vmem:[#allocation10 + $0x1c] sm:$0xf]
            %v752 = vld [vmem:[#allocation10 + $0x20] sm:$0xf]
            %v753 = vld [vmem:[#allocation10 + $0x24] sm:$0xf]
            %v754 = vld [vmem:[#allocation10 + $0x28] sm:$0xf]
            %v755 = vld [vmem:[#allocation10 + $0x2c] sm:$0xf]
            %v756 = vld [vmem:[#allocation10 + $0x30] sm:$0xf]
            %v757 = vld [vmem:[#allocation10 + $0x34] sm:$0xf]
            %v758 = vld [vmem:[#allocation10 + $0x38] sm:$0xf]
            %v759 = vld [vmem:[#allocation10 + $0x3c] sm:$0xf]
            %v760 = vlaneseq
            %v761 = vshrl.u32 %v760, 7
            %v762 = vsub.s32 0, %v761
            %v763 = vrot.slane %v404, %v762
            %v780 = vunpack.c.l.b16 %v728
            %v781 = vunpack.c.l.b16 %v729
            %v782 = vunpack.c.l.b16 %v730
            %v783 = vunpack.c.l.b16 %v731
            %v784 = vunpack.c.l.b16 %v732
            %v785 = vunpack.c.l.b16 %v733
            %v786 = vunpack.c.l.b16 %v734
            %v787 = vunpack.c.l.b16 %v735
            %v788 = vunpack.c.l.b16 %v736
            %v789 = vunpack.c.l.b16 %v737
            %v790 = vunpack.c.l.b16 %v738
            %v791 = vunpack.c.l.b16 %v739
            %v792 = vunpack.c.l.b16 %v740
            %v793 = vunpack.c.l.b16 %v741
            %v794 = vunpack.c.l.b16 %v742
            %v795 = vunpack.c.l.b16 %v743
            %v796 = vpack.c.b16 %v781, %v780
            %v797 = vpack.c.b16 %v783, %v782
            %v798 = vpack.c.b16 %v785, %v784
            %v799 = vpack.c.b16 %v787, %v786
            %v800 = vpack.c.b16 %v789, %v788
            %v801 = vpack.c.b16 %v791, %v790
            %v802 = vpack.c.b16 %v793, %v792
            %v803 = vpack.c.b16 %v795, %v794
            %v828 = vunpack.c.l.b16 %v744
            %v829 = vunpack.c.l.b16 %v745
            %v830 = vunpack.c.l.b16 %v746
            %v831 = vunpack.c.l.b16 %v747
            %v832 = vunpack.c.l.b16 %v748
            %v833 = vunpack.c.l.b16 %v749
            %v834 = vunpack.c.l.b16 %v750
            %v835 = vunpack.c.l.b16 %v751
            %v836 = vunpack.c.l.b16 %v752
            %v837 = vunpack.c.l.b16 %v753
            %v838 = vunpack.c.l.b16 %v754
            %v839 = vunpack.c.l.b16 %v755
            %v840 = vunpack.c.l.b16 %v756
            %v841 = vunpack.c.l.b16 %v757
            %v842 = vunpack.c.l.b16 %v758
            %v843 = vunpack.c.l.b16 %v759
            %v844 = vpack.c.b16 %v829, %v828
            %v845 = vpack.c.b16 %v831, %v830
            %v846 = vpack.c.b16 %v833, %v832
            %v847 = vpack.c.b16 %v835, %v834
            %v848 = vpack.c.b16 %v837, %v836
            %v849 = vpack.c.b16 %v839, %v838
            %v850 = vpack.c.b16 %v841, %v840
            %v851 = vpack.c.b16 %v843, %v842
            %860 = vmatprep.subr.bf16.mxu0 0
            %861 = vmatpush1.bf16.msra.mxu0 %v851
            %862 = vmatprep.subr.bf16.mxu0 0
            %863 = vmatpush1.bf16.msra.mxu0 %v850
            %864 = vmatprep.subr.bf16.mxu0 0
            %865 = vmatpush1.bf16.msra.mxu0 %v849
            %866 = vmatprep.subr.bf16.mxu0 0
            %867 = vmatpush1.bf16.msra.mxu0 %v848
            %868 = vmatprep.subr.bf16.mxu0 0
            %869 = vmatpush1.bf16.msra.mxu0 %v847
            %870 = vmatprep.subr.bf16.mxu0 0
            %871 = vmatpush1.bf16.msra.mxu0 %v846
            %872 = vmatprep.subr.bf16.mxu0 0
            %873 = vmatpush1.bf16.msra.mxu0 %v845
            %874 = vmatprep.subr.bf16.mxu0 0
            %875 = vmatpush1.bf16.msra.mxu0 %v844
            %876 = vmatprep.subr.bf16.mxu0 0
            %877 = vmatpush2.bf16.msra.mxu0 0
            %878 = vmatprep.subr.bf16.mxu0 0
            %879 = vmatpush2.bf16.msra.mxu0 0
            %880 = vmatprep.subr.bf16.mxu0 0
            %881 = vmatpush2.bf16.msra.mxu0 0
            %882 = vmatprep.subr.bf16.mxu0 0
            %883 = vmatpush2.bf16.msra.mxu0 0
            %884 = vmatprep.subr.bf16.mxu0 0
            %885 = vmatpush2.bf16.msra.mxu0 0
            %886 = vmatprep.subr.bf16.mxu0 0
            %887 = vmatpush2.bf16.msra.mxu0 0
            %888 = vmatprep.subr.bf16.mxu0 0
            %889 = vmatpush2.bf16.msra.mxu0 0
            %890 = vmatprep.subr.bf16.mxu0 0
            %891 = vmatpush2.bf16.msra.mxu0 0
            %892 = vmatprep.mubr.bf16.mxu0 0
            %893 = vmatmul.mubr.bf16.gmra.mxu0 %v796
            %v894 = vpop.f32.mrf.mxu0
            %v895 = vadd.f32 %v763, %v894
            %v896 = vpop.f32.mrf.mxu0
            %v897 = vpop.f32.mrf.mxu0
            %v898 = vadd.f32 %v763, %v897
            %v899 = vpop.f32.mrf.mxu0
            %900 = vmatprep.mubr.bf16.mxu0 0
            %901 = vmatmul.mubr.bf16.gmra.mxu0 %v797
            %v902 = vpop.f32.mrf.mxu0
            %v903 = vadd.f32 %v763, %v902
            %v904 = vpop.f32.mrf.mxu0
            %v905 = vpop.f32.mrf.mxu0
            %v906 = vadd.f32 %v763, %v905
            %v907 = vpop.f32.mrf.mxu0
            %908 = vmatprep.mubr.bf16.mxu0 0
            %909 = vmatmul.mubr.bf16.gmra.mxu0 %v798
            %v910 = vpop.f32.mrf.mxu0
            %v911 = vadd.f32 %v763, %v910
            %v912 = vpop.f32.mrf.mxu0
            %v913 = vpop.f32.mrf.mxu0
            %v914 = vadd.f32 %v763, %v913
            %v915 = vpop.f32.mrf.mxu0
            %916 = vmatprep.mubr.bf16.mxu0 0
            %917 = vmatmul.mubr.bf16.gmra.mxu0 %v799
            %v918 = vpop.f32.mrf.mxu0
            %v919 = vadd.f32 %v763, %v918
            %v920 = vpop.f32.mrf.mxu0
            %v921 = vpop.f32.mrf.mxu0
            %v922 = vadd.f32 %v763, %v921
            %v923 = vpop.f32.mrf.mxu0
            %924 = vmatprep.mubr.bf16.mxu0 0
            %925 = vmatmul.mubr.bf16.gmra.mxu0 %v800
            %v926 = vpop.f32.mrf.mxu0
            %v927 = vadd.f32 %v763, %v926
            %v928 = vpop.f32.mrf.mxu0
            %v929 = vpop.f32.mrf.mxu0
            %v930 = vadd.f32 %v763, %v929
            %v931 = vpop.f32.mrf.mxu0
            %932 = vmatprep.mubr.bf16.mxu0 0
            %933 = vmatmul.mubr.bf16.gmra.mxu0 %v801
            %v934 = vpop.f32.mrf.mxu0
            %v935 = vadd.f32 %v763, %v934
            %v936 = vpop.f32.mrf.mxu0
            %v937 = vpop.f32.mrf.mxu0
            %v938 = vadd.f32 %v763, %v937
            %v939 = vpop.f32.mrf.mxu0
            %940 = vmatprep.mubr.bf16.mxu0 0
            %941 = vmatmul.mubr.bf16.gmra.mxu0 %v802
            %v942 = vpop.f32.mrf.mxu0
            %v943 = vadd.f32 %v763, %v942
            %v944 = vpop.f32.mrf.mxu0
            %v945 = vpop.f32.mrf.mxu0
            %v946 = vadd.f32 %v763, %v945
            %v947 = vpop.f32.mrf.mxu0
            %948 = vmatprep.mubr.bf16.mxu0 0
            %949 = vmatmul.mubr.bf16.gmra.mxu0 %v803
            %v950 = vpop.f32.mrf.mxu0
            %v951 = vadd.f32 %v763, %v950
            %v952 = vpop.f32.mrf.mxu0
            %v953 = vpop.f32.mrf.mxu0
            %v954 = vadd.f32 %v763, %v953
            %v955 = vpop.f32.mrf.mxu0
            %956 = vdwg.mxu0
            %v957 = vpack.c.bf16 %v898, %v895
            %v958 = vpack.c.bf16 %v906, %v903
            %v959 = vpack.c.bf16 %v914, %v911
            %v960 = vpack.c.bf16 %v922, %v919
            %v961 = vpack.c.bf16 %v930, %v927
            %v962 = vpack.c.bf16 %v938, %v935
            %v963 = vpack.c.bf16 %v946, %v943
            %v964 = vpack.c.bf16 %v954, %v951
            %v973 = vunpack.c.l.b16 %v957
            %v974 = vunpack.c.h.b16 %v957
            %v975 = vunpack.c.l.b16 %v958
            %v976 = vunpack.c.h.b16 %v958
            %v977 = vunpack.c.l.b16 %v959
            %v978 = vunpack.c.h.b16 %v959
            %v979 = vunpack.c.l.b16 %v960
            %v980 = vunpack.c.h.b16 %v960
            %v981 = vunpack.c.l.b16 %v961
            %v982 = vunpack.c.h.b16 %v961
            %v983 = vunpack.c.l.b16 %v962
            %v984 = vunpack.c.h.b16 %v962
            %v985 = vunpack.c.l.b16 %v963
            %v986 = vunpack.c.h.b16 %v963
            %v987 = vunpack.c.l.b16 %v964
            %v988 = vunpack.c.h.b16 %v964
            %v989 = vpack.c.b16 %v973, %v973
            %v990 = vpack.c.b16 %v974, %v974
            %v991 = vpack.c.b16 %v975, %v975
            %v992 = vpack.c.b16 %v976, %v976
            %v993 = vpack.c.b16 %v977, %v977
            %v994 = vpack.c.b16 %v978, %v978
            %v995 = vpack.c.b16 %v979, %v979
            %v996 = vpack.c.b16 %v980, %v980
            %v997 = vpack.c.b16 %v981, %v981
            %v998 = vpack.c.b16 %v982, %v982
            %v999 = vpack.c.b16 %v983, %v983
            %v1000 = vpack.c.b16 %v984, %v984
            %v1001 = vpack.c.b16 %v985, %v985
            %v1002 = vpack.c.b16 %v986, %v986
            %v1003 = vpack.c.b16 %v987, %v987
            %v1004 = vpack.c.b16 %v988, %v988
            %1021 = vst [vmem:[#allocation2] sm:$0xf] %v989
            %1022 = vst [vmem:[#allocation2 + $0x4] sm:$0xf] %v990
            %1023 = vst [vmem:[#allocation2 + $0x8] sm:$0xf] %v991
            %1024 = vst [vmem:[#allocation2 + $0xc] sm:$0xf] %v992
            %1025 = vst [vmem:[#allocation2 + $0x10] sm:$0xf] %v993
            %1026 = vst [vmem:[#allocation2 + $0x14] sm:$0xf] %v994
            %1027 = vst [vmem:[#allocation2 + $0x18] sm:$0xf] %v995
            %1028 = vst [vmem:[#allocation2 + $0x1c] sm:$0xf] %v996
            %1029 = vst [vmem:[#allocation2 + $0x20] sm:$0xf] %v997
            %1030 = vst [vmem:[#allocation2 + $0x24] sm:$0xf] %v998
            %1031 = vst [vmem:[#allocation2 + $0x28] sm:$0xf] %v999
            %1032 = vst [vmem:[#allocation2 + $0x2c] sm:$0xf] %v1000
            %1033 = vst [vmem:[#allocation2 + $0x30] sm:$0xf] %v1001
            %1034 = vst [vmem:[#allocation2 + $0x34] sm:$0xf] %v1002
            %1035 = vst [vmem:[#allocation2 + $0x38] sm:$0xf] %v1003
            %1036 = vst [vmem:[#allocation2 + $0x3c] sm:$0xf] %v1004
          $region88: #{tpu_custom_call.1} parent=79 // pred_fallthru
            _
          %p1037 = scmp.eq.s32.totalorder %s29, 2
          // Predicated region
          $region89: #{tpu_custom_call.1} parent=79 // pred_check
            %p1038 = pneg %p1037
          $region90: #{tpu_custom_call.1} parent=79 // pred_check_branch
            %1040 = sbr.rel (%p1038) target = $region92
          $region91: #{tpu_custom_call.1} parent=79 // pred_region
            %v1041 = vld [vmem:[#allocation3] sm:$0xf]
            %v1042 = vld [vmem:[#allocation3 + $0x4] sm:$0xf]
            %v1043 = vld [vmem:[#allocation3 + $0x8] sm:$0xf]
            %v1044 = vld [vmem:[#allocation3 + $0xc] sm:$0xf]
            %v1045 = vld [vmem:[#allocation3 + $0x10] sm:$0xf]
            %v1046 = vld [vmem:[#allocation3 + $0x14] sm:$0xf]
            %v1047 = vld [vmem:[#allocation3 + $0x18] sm:$0xf]
            %v1048 = vld [vmem:[#allocation3 + $0x1c] sm:$0xf]
            %v1049 = vld [vmem:[#allocation3 + $0x20] sm:$0xf]
            %v1050 = vld [vmem:[#allocation3 + $0x24] sm:$0xf]
            %v1051 = vld [vmem:[#allocation3 + $0x28] sm:$0xf]
            %v1052 = vld [vmem:[#allocation3 + $0x2c] sm:$0xf]
            %v1053 = vld [vmem:[#allocation3 + $0x30] sm:$0xf]
            %v1054 = vld [vmem:[#allocation3 + $0x34] sm:$0xf]
            %v1055 = vld [vmem:[#allocation3 + $0x38] sm:$0xf]
            %v1056 = vld [vmem:[#allocation3 + $0x3c] sm:$0xf]
            %v1057 = vld [vmem:[#allocation12] sm:$0xf]
            %v1058 = vld [vmem:[#allocation12 + $0x4] sm:$0xf]
            %v1059 = vld [vmem:[#allocation12 + $0x8] sm:$0xf]
            %v1060 = vld [vmem:[#allocation12 + $0xc] sm:$0xf]
            %v1061 = vld [vmem:[#allocation12 + $0x10] sm:$0xf]
            %v1062 = vld [vmem:[#allocation12 + $0x14] sm:$0xf]
            %v1063 = vld [vmem:[#allocation12 + $0x18] sm:$0xf]
            %v1064 = vld [vmem:[#allocation12 + $0x1c] sm:$0xf]
            %v1065 = vld [vmem:[#allocation12 + $0x20] sm:$0xf]
            %v1066 = vld [vmem:[#allocation12 + $0x24] sm:$0xf]
            %v1067 = vld [vmem:[#allocation12 + $0x28] sm:$0xf]
            %v1068 = vld [vmem:[#allocation12 + $0x2c] sm:$0xf]
            %v1069 = vld [vmem:[#allocation12 + $0x30] sm:$0xf]
            %v1070 = vld [vmem:[#allocation12 + $0x34] sm:$0xf]
            %v1071 = vld [vmem:[#allocation12 + $0x38] sm:$0xf]
            %v1072 = vld [vmem:[#allocation12 + $0x3c] sm:$0xf]
            %s1073 = scalar_lea.vmem [#allocation3], 64
            %v1074 = vld [vmem:[%s1073] sm:$0xf]
            %v1075 = vld [vmem:[%s1073 + $0x4] sm:$0xf]
            %v1076 = vld [vmem:[%s1073 + $0x8] sm:$0xf]
            %v1077 = vld [vmem:[%s1073 + $0xc] sm:$0xf]
            %v1078 = vld [vmem:[%s1073 + $0x10] sm:$0xf]
            %v1079 = vld [vmem:[%s1073 + $0x14] sm:$0xf]
            %v1080 = vld [vmem:[%s1073 + $0x18] sm:$0xf]
            %v1081 = vld [vmem:[%s1073 + $0x1c] sm:$0xf]
            %v1082 = vld [vmem:[%s1073 + $0x20] sm:$0xf]
            %v1083 = vld [vmem:[%s1073 + $0x24] sm:$0xf]
            %v1084 = vld [vmem:[%s1073 + $0x28] sm:$0xf]
            %v1085 = vld [vmem:[%s1073 + $0x2c] sm:$0xf]
            %v1086 = vld [vmem:[%s1073 + $0x30] sm:$0xf]
            %v1087 = vld [vmem:[%s1073 + $0x34] sm:$0xf]
            %v1088 = vld [vmem:[%s1073 + $0x38] sm:$0xf]
            %v1089 = vld [vmem:[%s1073 + $0x3c] sm:$0xf]
            %v1090 = vld [vmem:[#allocation13] sm:$0xf]
            %v1091 = vld [vmem:[#allocation13 + $0x4] sm:$0xf]
            %v1092 = vld [vmem:[#allocation13 + $0x8] sm:$0xf]
            %v1093 = vld [vmem:[#allocation13 + $0xc] sm:$0xf]
            %v1094 = vld [vmem:[#allocation13 + $0x10] sm:$0xf]
            %v1095 = vld [vmem:[#allocation13 + $0x14] sm:$0xf]
            %v1096 = vld [vmem:[#allocation13 + $0x18] sm:$0xf]
            %v1097 = vld [vmem:[#allocation13 + $0x1c] sm:$0xf]
            %v1098 = vld [vmem:[#allocation13 + $0x20] sm:$0xf]
            %v1099 = vld [vmem:[#allocation13 + $0x24] sm:$0xf]
            %v1100 = vld [vmem:[#allocation13 + $0x28] sm:$0xf]
            %v1101 = vld [vmem:[#allocation13 + $0x2c] sm:$0xf]
            %v1102 = vld [vmem:[#allocation13 + $0x30] sm:$0xf]
            %v1103 = vld [vmem:[#allocation13 + $0x34] sm:$0xf]
            %v1104 = vld [vmem:[#allocation13 + $0x38] sm:$0xf]
            %v1105 = vld [vmem:[#allocation13 + $0x3c] sm:$0xf]
            %v1122 = vunpack.c.l.b16 %v1074
            %v1123 = vunpack.c.l.b16 %v1075
            %v1124 = vunpack.c.l.b16 %v1076
            %v1125 = vunpack.c.l.b16 %v1077
            %v1126 = vunpack.c.l.b16 %v1078
            %v1127 = vunpack.c.l.b16 %v1079
            %v1128 = vunpack.c.l.b16 %v1080
            %v1129 = vunpack.c.l.b16 %v1081
            %v1130 = vunpack.c.l.b16 %v1082
            %v1131 = vunpack.c.l.b16 %v1083
            %v1132 = vunpack.c.l.b16 %v1084
            %v1133 = vunpack.c.l.b16 %v1085
            %v1134 = vunpack.c.l.b16 %v1086
            %v1135 = vunpack.c.l.b16 %v1087
            %v1136 = vunpack.c.l.b16 %v1088
            %v1137 = vunpack.c.l.b16 %v1089
            %v1138 = vpack.c.b16 %v1123, %v1122
            %v1139 = vpack.c.b16 %v1125, %v1124
            %v1140 = vpack.c.b16 %v1127, %v1126
            %v1141 = vpack.c.b16 %v1129, %v1128
            %v1142 = vpack.c.b16 %v1131, %v1130
            %v1143 = vpack.c.b16 %v1133, %v1132
            %v1144 = vpack.c.b16 %v1135, %v1134
            %v1145 = vpack.c.b16 %v1137, %v1136
            %v1170 = vunpack.c.l.b16 %v1090
            %v1171 = vunpack.c.l.b16 %v1091
            %v1172 = vunpack.c.l.b16 %v1092
            %v1173 = vunpack.c.l.b16 %v1093
            %v1174 = vunpack.c.l.b16 %v1094
            %v1175 = vunpack.c.l.b16 %v1095
            %v1176 = vunpack.c.l.b16 %v1096
            %v1177 = vunpack.c.l.b16 %v1097
            %v1178 = vunpack.c.l.b16 %v1098
            %v1179 = vunpack.c.l.b16 %v1099
            %v1180 = vunpack.c.l.b16 %v1100
            %v1181 = vunpack.c.l.b16 %v1101
            %v1182 = vunpack.c.l.b16 %v1102
            %v1183 = vunpack.c.l.b16 %v1103
            %v1184 = vunpack.c.l.b16 %v1104
            %v1185 = vunpack.c.l.b16 %v1105
            %v1186 = vpack.c.b16 %v1171, %v1170
            %v1187 = vpack.c.b16 %v1173, %v1172
            %v1188 = vpack.c.b16 %v1175, %v1174
            %v1189 = vpack.c.b16 %v1177, %v1176
            %v1190 = vpack.c.b16 %v1179, %v1178
            %v1191 = vpack.c.b16 %v1181, %v1180
            %v1192 = vpack.c.b16 %v1183, %v1182
            %v1193 = vpack.c.b16 %v1185, %v1184
            %1202 = vmatprep.subr.bf16.mxu0 0
            %1203 = vmatpush1.bf16.msra.mxu0 %v1193
            %1204 = vmatprep.subr.bf16.mxu0 0
            %1205 = vmatpush1.bf16.msra.mxu0 %v1192
            %1206 = vmatprep.subr.bf16.mxu0 0
            %1207 = vmatpush1.bf16.msra.mxu0 %v1191
            %1208 = vmatprep.subr.bf16.mxu0 0
            %1209 = vmatpush1.bf16.msra.mxu0 %v1190
            %1210 = vmatprep.subr.bf16.mxu0 0
            %1211 = vmatpush1.bf16.msra.mxu0 %v1189
            %1212 = vmatprep.subr.bf16.mxu0 0
            %1213 = vmatpush1.bf16.msra.mxu0 %v1188
            %1214 = vmatprep.subr.bf16.mxu0 0
            %1215 = vmatpush1.bf16.msra.mxu0 %v1187
            %1216 = vmatprep.subr.bf16.mxu0 0
            %1217 = vmatpush1.bf16.msra.mxu0 %v1186
            %1218 = vmatprep.subr.bf16.mxu0 0
            %1219 = vmatpush2.bf16.msra.mxu0 0
            %1220 = vmatprep.subr.bf16.mxu0 0
            %1221 = vmatpush2.bf16.msra.mxu0 0
            %1222 = vmatprep.subr.bf16.mxu0 0
            %1223 = vmatpush2.bf16.msra.mxu0 0
            %1224 = vmatprep.subr.bf16.mxu0 0
            %1225 = vmatpush2.bf16.msra.mxu0 0
            %1226 = vmatprep.subr.bf16.mxu0 0
            %1227 = vmatpush2.bf16.msra.mxu0 0
            %1228 = vmatprep.subr.bf16.mxu0 0
            %1229 = vmatpush2.bf16.msra.mxu0 0
            %1230 = vmatprep.subr.bf16.mxu0 0
            %1231 = vmatpush2.bf16.msra.mxu0 0
            %1232 = vmatprep.subr.bf16.mxu0 0
            %1233 = vmatpush2.bf16.msra.mxu0 0
            %1234 = vmatprep.mubr.bf16.mxu0 0
            %1235 = vmatmul.mubr.bf16.gmra.mxu0 %v1138
            %v1236 = vpop.f32.mrf.mxu0
            %v1237 = vadd.f32 0.0, %v1236
            %v1238 = vpop.f32.mrf.mxu0
            %v1239 = vpop.f32.mrf.mxu0
            %v1240 = vadd.f32 0.0, %v1239
            %v1241 = vpop.f32.mrf.mxu0
            %1242 = vmatprep.mubr.bf16.mxu0 0
            %1243 = vmatmul.mubr.bf16.gmra.mxu0 %v1139
            %v1244 = vpop.f32.mrf.mxu0
            %v1245 = vadd.f32 0.0, %v1244
            %v1246 = vpop.f32.mrf.mxu0
            %v1247 = vpop.f32.mrf.mxu0
            %v1248 = vadd.f32 0.0, %v1247
            %v1249 = vpop.f32.mrf.mxu0
            %1250 = vmatprep.mubr.bf16.mxu0 0
            %1251 = vmatmul.mubr.bf16.gmra.mxu0 %v1140
            %v1252 = vpop.f32.mrf.mxu0
            %v1253 = vadd.f32 0.0, %v1252
            %v1254 = vpop.f32.mrf.mxu0
            %v1255 = vpop.f32.mrf.mxu0
            %v1256 = vadd.f32 0.0, %v1255
            %v1257 = vpop.f32.mrf.mxu0
            %1258 = vmatprep.mubr.bf16.mxu0 0
            %1259 = vmatmul.mubr.bf16.gmra.mxu0 %v1141
            %v1260 = vpop.f32.mrf.mxu0
            %v1261 = vadd.f32 0.0, %v1260
            %v1262 = vpop.f32.mrf.mxu0
            %v1263 = vpop.f32.mrf.mxu0
            %v1264 = vadd.f32 0.0, %v1263
            %v1265 = vpop.f32.mrf.mxu0
            %1266 = vmatprep.mubr.bf16.mxu0 0
            %1267 = vmatmul.mubr.bf16.gmra.mxu0 %v1142
            %v1268 = vpop.f32.mrf.mxu0
            %v1269 = vadd.f32 0.0, %v1268
            %v1270 = vpop.f32.mrf.mxu0
            %v1271 = vpop.f32.mrf.mxu0
            %v1272 = vadd.f32 0.0, %v1271
            %v1273 = vpop.f32.mrf.mxu0
            %1274 = vmatprep.mubr.bf16.mxu0 0
            %1275 = vmatmul.mubr.bf16.gmra.mxu0 %v1143
            %v1276 = vpop.f32.mrf.mxu0
            %v1277 = vadd.f32 0.0, %v1276
            %v1278 = vpop.f32.mrf.mxu0
            %v1279 = vpop.f32.mrf.mxu0
            %v1280 = vadd.f32 0.0, %v1279
            %v1281 = vpop.f32.mrf.mxu0
            %1282 = vmatprep.mubr.bf16.mxu0 0
            %1283 = vmatmul.mubr.bf16.gmra.mxu0 %v1144
            %v1284 = vpop.f32.mrf.mxu0
            %v1285 = vadd.f32 0.0, %v1284
            %v1286 = vpop.f32.mrf.mxu0
            %v1287 = vpop.f32.mrf.mxu0
            %v1288 = vadd.f32 0.0, %v1287
            %v1289 = vpop.f32.mrf.mxu0
            %1290 = vmatprep.mubr.bf16.mxu0 0
            %1291 = vmatmul.mubr.bf16.gmra.mxu0 %v1145
            %v1292 = vpop.f32.mrf.mxu0
            %v1293 = vadd.f32 0.0, %v1292
            %v1294 = vpop.f32.mrf.mxu0
            %v1295 = vpop.f32.mrf.mxu0
            %v1296 = vadd.f32 0.0, %v1295
            %v1297 = vpop.f32.mrf.mxu0
            %1298 = vdwg.mxu0
            %v1315 = vunpack.c.l.b16 %v1041
            %v1316 = vunpack.c.l.b16 %v1042
            %v1317 = vunpack.c.l.b16 %v1043
            %v1318 = vunpack.c.l.b16 %v1044
            %v1319 = vunpack.c.l.b16 %v1045
            %v1320 = vunpack.c.l.b16 %v1046
            %v1321 = vunpack.c.l.b16 %v1047
            %v1322 = vunpack.c.l.b16 %v1048
            %v1323 = vunpack.c.l.b16 %v1049
            %v1324 = vunpack.c.l.b16 %v1050
            %v1325 = vunpack.c.l.b16 %v1051
            %v1326 = vunpack.c.l.b16 %v1052
            %v1327 = vunpack.c.l.b16 %v1053
            %v1328 = vunpack.c.l.b16 %v1054
            %v1329 = vunpack.c.l.b16 %v1055
            %v1330 = vunpack.c.l.b16 %v1056
            %v1331 = vpack.c.b16 %v1316, %v1315
            %v1332 = vpack.c.b16 %v1318, %v1317
            %v1333 = vpack.c.b16 %v1320, %v1319
            %v1334 = vpack.c.b16 %v1322, %v1321
            %v1335 = vpack.c.b16 %v1324, %v1323
            %v1336 = vpack.c.b16 %v1326, %v1325
            %v1337 = vpack.c.b16 %v1328, %v1327
            %v1338 = vpack.c.b16 %v1330, %v1329
            %v1363 = vunpack.c.l.b16 %v1057
            %v1364 = vunpack.c.l.b16 %v1058
            %v1365 = vunpack.c.l.b16 %v1059
            %v1366 = vunpack.c.l.b16 %v1060
            %v1367 = vunpack.c.l.b16 %v1061
            %v1368 = vunpack.c.l.b16 %v1062
            %v1369 = vunpack.c.l.b16 %v1063
            %v1370 = vunpack.c.l.b16 %v1064
            %v1371 = vunpack.c.l.b16 %v1065
            %v1372 = vunpack.c.l.b16 %v1066
            %v1373 = vunpack.c.l.b16 %v1067
            %v1374 = vunpack.c.l.b16 %v1068
            %v1375 = vunpack.c.l.b16 %v1069
            %v1376 = vunpack.c.l.b16 %v1070
            %v1377 = vunpack.c.l.b16 %v1071
            %v1378 = vunpack.c.l.b16 %v1072
            %v1379 = vpack.c.b16 %v1364, %v1363
            %v1380 = vpack.c.b16 %v1366, %v1365
            %v1381 = vpack.c.b16 %v1368, %v1367
            %v1382 = vpack.c.b16 %v1370, %v1369
            %v1383 = vpack.c.b16 %v1372, %v1371
            %v1384 = vpack.c.b16 %v1374, %v1373
            %v1385 = vpack.c.b16 %v1376, %v1375
            %v1386 = vpack.c.b16 %v1378, %v1377
            %1395 = vmatprep.subr.bf16.mxu0 0
            %1396 = vmatpush1.bf16.msra.mxu0 %v1386
            %1397 = vmatprep.subr.bf16.mxu0 0
            %1398 = vmatpush1.bf16.msra.mxu0 %v1385
            %1399 = vmatprep.subr.bf16.mxu0 0
            %1400 = vmatpush1.bf16.msra.mxu0 %v1384
            %1401 = vmatprep.subr.bf16.mxu0 0
            %1402 = vmatpush1.bf16.msra.mxu0 %v1383
            %1403 = vmatprep.subr.bf16.mxu0 0
            %1404 = vmatpush1.bf16.msra.mxu0 %v1382
            %1405 = vmatprep.subr.bf16.mxu0 0
            %1406 = vmatpush1.bf16.msra.mxu0 %v1381
            %1407 = vmatprep.subr.bf16.mxu0 0
            %1408 = vmatpush1.bf16.msra.mxu0 %v1380
            %1409 = vmatprep.subr.bf16.mxu0 0
            %1410 = vmatpush1.bf16.msra.mxu0 %v1379
            %1411 = vmatprep.subr.bf16.mxu0 0
            %1412 = vmatpush2.bf16.msra.mxu0 0
            %1413 = vmatprep.subr.bf16.mxu0 0
            %1414 = vmatpush2.bf16.msra.mxu0 0
            %1415 = vmatprep.subr.bf16.mxu0 0
            %1416 = vmatpush2.bf16.msra.mxu0 0
            %1417 = vmatprep.subr.bf16.mxu0 0
            %1418 = vmatpush2.bf16.msra.mxu0 0
            %1419 = vmatprep.subr.bf16.mxu0 0
            %1420 = vmatpush2.bf16.msra.mxu0 0
            %1421 = vmatprep.subr.bf16.mxu0 0
            %1422 = vmatpush2.bf16.msra.mxu0 0
            %1423 = vmatprep.subr.bf16.mxu0 0
            %1424 = vmatpush2.bf16.msra.mxu0 0
            %1425 = vmatprep.subr.bf16.mxu0 0
            %1426 = vmatpush2.bf16.msra.mxu0 0
            %1427 = vmatprep.mubr.bf16.mxu0 0
            %1428 = vmatmul.mubr.bf16.gmra.mxu0 %v1331
            %v1429 = vpop.f32.mrf.mxu0
            %v1430 = vadd.f32 %v1237, %v1429
            %v1431 = vpop.f32.mrf.mxu0
            %v1432 = vpop.f32.mrf.mxu0
            %v1433 = vadd.f32 %v1240, %v1432
            %v1434 = vpop.f32.mrf.mxu0
            %1435 = vmatprep.mubr.bf16.mxu0 0
            %1436 = vmatmul.mubr.bf16.gmra.mxu0 %v1332
            %v1437 = vpop.f32.mrf.mxu0
            %v1438 = vadd.f32 %v1245, %v1437
            %v1439 = vpop.f32.mrf.mxu0
            %v1440 = vpop.f32.mrf.mxu0
            %v1441 = vadd.f32 %v1248, %v1440
            %v1442 = vpop.f32.mrf.mxu0
            %1443 = vmatprep.mubr.bf16.mxu0 0
            %1444 = vmatmul.mubr.bf16.gmra.mxu0 %v1333
            %v1445 = vpop.f32.mrf.mxu0
            %v1446 = vadd.f32 %v1253, %v1445
            %v1447 = vpop.f32.mrf.mxu0
            %v1448 = vpop.f32.mrf.mxu0
            %v1449 = vadd.f32 %v1256, %v1448
            %v1450 = vpop.f32.mrf.mxu0
            %1451 = vmatprep.mubr.bf16.mxu0 0
            %1452 = vmatmul.mubr.bf16.gmra.mxu0 %v1334
            %v1453 = vpop.f32.mrf.mxu0
            %v1454 = vadd.f32 %v1261, %v1453
            %v1455 = vpop.f32.mrf.mxu0
            %v1456 = vpop.f32.mrf.mxu0
            %v1457 = vadd.f32 %v1264, %v1456
            %v1458 = vpop.f32.mrf.mxu0
            %1459 = vmatprep.mubr.bf16.mxu0 0
            %1460 = vmatmul.mubr.bf16.gmra.mxu0 %v1335
            %v1461 = vpop.f32.mrf.mxu0
            %v1462 = vadd.f32 %v1269, %v1461
            %v1463 = vpop.f32.mrf.mxu0
            %v1464 = vpop.f32.mrf.mxu0
            %v1465 = vadd.f32 %v1272, %v1464
            %v1466 = vpop.f32.mrf.mxu0
            %1467 = vmatprep.mubr.bf16.mxu0 0
            %1468 = vmatmul.mubr.bf16.gmra.mxu0 %v1336
            %v1469 = vpop.f32.mrf.mxu0
            %v1470 = vadd.f32 %v1277, %v1469
            %v1471 = vpop.f32.mrf.mxu0
            %v1472 = vpop.f32.mrf.mxu0
            %v1473 = vadd.f32 %v1280, %v1472
            %v1474 = vpop.f32.mrf.mxu0
            %1475 = vmatprep.mubr.bf16.mxu0 0
            %1476 = vmatmul.mubr.bf16.gmra.mxu0 %v1337
            %v1477 = vpop.f32.mrf.mxu0
            %v1478 = vadd.f32 %v1285, %v1477
            %v1479 = vpop.f32.mrf.mxu0
            %v1480 = vpop.f32.mrf.mxu0
            %v1481 = vadd.f32 %v1288, %v1480
            %v1482 = vpop.f32.mrf.mxu0
            %1483 = vmatprep.mubr.bf16.mxu0 0
            %1484 = vmatmul.mubr.bf16.gmra.mxu0 %v1338
            %v1485 = vpop.f32.mrf.mxu0
            %v1486 = vadd.f32 %v1293, %v1485
            %v1487 = vpop.f32.mrf.mxu0
            %v1488 = vpop.f32.mrf.mxu0
            %v1489 = vadd.f32 %v1296, %v1488
            %v1490 = vpop.f32.mrf.mxu0
            %1491 = vdwg.mxu0
            %v1492 = vlaneseq
            %v1493 = vshrl.u32 %v1492, 7
            %v1494 = vsub.s32 0, %v1493
            %v1495 = vrot.slane %v404, %v1494
            %v1496 = vadd.f32 %v1430, %v1495
            %v1497 = vadd.f32 %v1433, %v1495
            %v1498 = vadd.f32 %v1438, %v1495
            %v1499 = vadd.f32 %v1441, %v1495
            %v1500 = vadd.f32 %v1446, %v1495
            %v1501 = vadd.f32 %v1449, %v1495
            %v1502 = vadd.f32 %v1454, %v1495
            %v1503 = vadd.f32 %v1457, %v1495
            %v1504 = vadd.f32 %v1462, %v1495
            %v1505 = vadd.f32 %v1465, %v1495
            %v1506 = vadd.f32 %v1470, %v1495
            %v1507 = vadd.f32 %v1473, %v1495
            %v1508 = vadd.f32 %v1478, %v1495
            %v1509 = vadd.f32 %v1481, %v1495
            %v1510 = vadd.f32 %v1486, %v1495
            %v1511 = vadd.f32 %v1489, %v1495
            %v1512 = vpack.c.bf16 %v1497, %v1496
            %v1513 = vpack.c.bf16 %v1499, %v1498
            %v1514 = vpack.c.bf16 %v1501, %v1500
            %v1515 = vpack.c.bf16 %v1503, %v1502
            %v1516 = vpack.c.bf16 %v1505, %v1504
            %v1517 = vpack.c.bf16 %v1507, %v1506
            %v1518 = vpack.c.bf16 %v1509, %v1508
            %v1519 = vpack.c.bf16 %v1511, %v1510
            %v1528 = vunpack.c.l.b16 %v1512
            %v1529 = vunpack.c.h.b16 %v1512
            %v1530 = vunpack.c.l.b16 %v1513
            %v1531 = vunpack.c.h.b16 %v1513
            %v1532 = vunpack.c.l.b16 %v1514
            %v1533 = vunpack.c.h.b16 %v1514
            %v1534 = vunpack.c.l.b16 %v1515
            %v1535 = vunpack.c.h.b16 %v1515
            %v1536 = vunpack.c.l.b16 %v1516
            %v1537 = vunpack.c.h.b16 %v1516
            %v1538 = vunpack.c.l.b16 %v1517
            %v1539 = vunpack.c.h.b16 %v1517
            %v1540 = vunpack.c.l.b16 %v1518
            %v1541 = vunpack.c.h.b16 %v1518
            %v1542 = vunpack.c.l.b16 %v1519
            %v1543 = vunpack.c.h.b16 %v1519
            %v1544 = vpack.c.b16 %v1528, %v1528
            %v1545 = vpack.c.b16 %v1529, %v1529
            %v1546 = vpack.c.b16 %v1530, %v1530
            %v1547 = vpack.c.b16 %v1531, %v1531
            %v1548 = vpack.c.b16 %v1532, %v1532
            %v1549 = vpack.c.b16 %v1533, %v1533
            %v1550 = vpack.c.b16 %v1534, %v1534
            %v1551 = vpack.c.b16 %v1535, %v1535
            %v1552 = vpack.c.b16 %v1536, %v1536
            %v1553 = vpack.c.b16 %v1537, %v1537
            %v1554 = vpack.c.b16 %v1538, %v1538
            %v1555 = vpack.c.b16 %v1539, %v1539
            %v1556 = vpack.c.b16 %v1540, %v1540
            %v1557 = vpack.c.b16 %v1541, %v1541
            %v1558 = vpack.c.b16 %v1542, %v1542
            %v1559 = vpack.c.b16 %v1543, %v1543
            %1576 = vst [vmem:[#allocation2] sm:$0xf] %v1544
            %1577 = vst [vmem:[#allocation2 + $0x4] sm:$0xf] %v1545
            %1578 = vst [vmem:[#allocation2 + $0x8] sm:$0xf] %v1546
            %1579 = vst [vmem:[#allocation2 + $0xc] sm:$0xf] %v1547
            %1580 = vst [vmem:[#allocation2 + $0x10] sm:$0xf] %v1548
            %1581 = vst [vmem:[#allocation2 + $0x14] sm:$0xf] %v1549
            %1582 = vst [vmem:[#allocation2 + $0x18] sm:$0xf] %v1550
            %1583 = vst [vmem:[#allocation2 + $0x1c] sm:$0xf] %v1551
            %1584 = vst [vmem:[#allocation2 + $0x20] sm:$0xf] %v1552
            %1585 = vst [vmem:[#allocation2 + $0x24] sm:$0xf] %v1553
            %1586 = vst [vmem:[#allocation2 + $0x28] sm:$0xf] %v1554
            %1587 = vst [vmem:[#allocation2 + $0x2c] sm:$0xf] %v1555
            %1588 = vst [vmem:[#allocation2 + $0x30] sm:$0xf] %v1556
            %1589 = vst [vmem:[#allocation2 + $0x34] sm:$0xf] %v1557
            %1590 = vst [vmem:[#allocation2 + $0x38] sm:$0xf] %v1558
            %1591 = vst [vmem:[#allocation2 + $0x3c] sm:$0xf] %v1559
          $region92: #{tpu_custom_call.1} parent=79 // pred_fallthru
            _
        $region80: #{tpu_custom_call.1} parent=47 // pred_fallthru
          _
        %v1592 = vld [vmem:[#allocation7] sm:$0xf]
        %v1593 = vld [vmem:[#allocation7 + $0x4] sm:$0xf]
        %v1594 = vld [vmem:[#allocation7 + $0x8] sm:$0xf]
        %v1595 = vld [vmem:[#allocation7 + $0xc] sm:$0xf]
        %v1596 = vld [vmem:[#allocation7 + $0x10] sm:$0xf]
        %v1597 = vld [vmem:[#allocation7 + $0x14] sm:$0xf]
        %v1598 = vld [vmem:[#allocation7 + $0x18] sm:$0xf]
        %v1599 = vld [vmem:[#allocation7 + $0x1c] sm:$0xf]
        %v1600 = vld [vmem:[#allocation7 + $0x20] sm:$0xf]
        %v1601 = vld [vmem:[#allocation7 + $0x24] sm:$0xf]
        %v1602 = vld [vmem:[#allocation7 + $0x28] sm:$0xf]
        %v1603 = vld [vmem:[#allocation7 + $0x2c] sm:$0xf]
        %v1604 = vld [vmem:[#allocation7 + $0x30] sm:$0xf]
        %v1605 = vld [vmem:[#allocation7 + $0x34] sm:$0xf]
        %v1606 = vld [vmem:[#allocation7 + $0x38] sm:$0xf]
        %v1607 = vld [vmem:[#allocation7 + $0x3c] sm:$0xf]
        %v1608 = vld [vmem:[#allocation2] sm:$0xf]
        %v1609 = vld [vmem:[#allocation2 + $0x4] sm:$0xf]
        %v1610 = vld [vmem:[#allocation2 + $0x8] sm:$0xf]
        %v1611 = vld [vmem:[#allocation2 + $0xc] sm:$0xf]
        %v1612 = vld [vmem:[#allocation2 + $0x10] sm:$0xf]
        %v1613 = vld [vmem:[#allocation2 + $0x14] sm:$0xf]
        %v1614 = vld [vmem:[#allocation2 + $0x18] sm:$0xf]
        %v1615 = vld [vmem:[#allocation2 + $0x1c] sm:$0xf]
        %v1616 = vld [vmem:[#allocation2 + $0x20] sm:$0xf]
        %v1617 = vld [vmem:[#allocation2 + $0x24] sm:$0xf]
        %v1618 = vld [vmem:[#allocation2 + $0x28] sm:$0xf]
        %v1619 = vld [vmem:[#allocation2 + $0x2c] sm:$0xf]
        %v1620 = vld [vmem:[#allocation2 + $0x30] sm:$0xf]
        %v1621 = vld [vmem:[#allocation2 + $0x34] sm:$0xf]
        %v1622 = vld [vmem:[#allocation2 + $0x38] sm:$0xf]
        %v1623 = vld [vmem:[#allocation2 + $0x3c] sm:$0xf]
        %v1640 = vunpack.c.l.b16 %v1592
        %v1641 = vunpack.c.l.b16 %v1593
        %v1642 = vunpack.c.l.b16 %v1594
        %v1643 = vunpack.c.l.b16 %v1595
        %v1644 = vunpack.c.l.b16 %v1596
        %v1645 = vunpack.c.l.b16 %v1597
        %v1646 = vunpack.c.l.b16 %v1598
        %v1647 = vunpack.c.l.b16 %v1599
        %v1648 = vunpack.c.l.b16 %v1600
        %v1649 = vunpack.c.l.b16 %v1601
        %v1650 = vunpack.c.l.b16 %v1602
        %v1651 = vunpack.c.l.b16 %v1603
        %v1652 = vunpack.c.l.b16 %v1604
        %v1653 = vunpack.c.l.b16 %v1605
        %v1654 = vunpack.c.l.b16 %v1606
        %v1655 = vunpack.c.l.b16 %v1607
        %v1656 = vpack.c.b16 %v1641, %v1640
        %v1657 = vpack.c.b16 %v1643, %v1642
        %v1658 = vpack.c.b16 %v1645, %v1644
        %v1659 = vpack.c.b16 %v1647, %v1646
        %v1660 = vpack.c.b16 %v1649, %v1648
        %v1661 = vpack.c.b16 %v1651, %v1650
        %v1662 = vpack.c.b16 %v1653, %v1652
        %v1663 = vpack.c.b16 %v1655, %v1654
        %v1688 = vunpack.c.l.b16 %v1608
        %v1689 = vunpack.c.l.b16 %v1609
        %v1690 = vunpack.c.l.b16 %v1610
        %v1691 = vunpack.c.l.b16 %v1611
        %v1692 = vunpack.c.l.b16 %v1612
        %v1693 = vunpack.c.l.b16 %v1613
        %v1694 = vunpack.c.l.b16 %v1614
        %v1695 = vunpack.c.l.b16 %v1615
        %v1696 = vunpack.c.l.b16 %v1616
        %v1697 = vunpack.c.l.b16 %v1617
        %v1698 = vunpack.c.l.b16 %v1618
        %v1699 = vunpack.c.l.b16 %v1619
        %v1700 = vunpack.c.l.b16 %v1620
        %v1701 = vunpack.c.l.b16 %v1621
        %v1702 = vunpack.c.l.b16 %v1622
        %v1703 = vunpack.c.l.b16 %v1623
        %v1704 = vpack.c.b16 %v1689, %v1688
        %v1705 = vpack.c.b16 %v1691, %v1690
        %v1706 = vpack.c.b16 %v1693, %v1692
        %v1707 = vpack.c.b16 %v1695, %v1694
        %v1708 = vpack.c.b16 %v1697, %v1696
        %v1709 = vpack.c.b16 %v1699, %v1698
        %v1710 = vpack.c.b16 %v1701, %v1700
        %v1711 = vpack.c.b16 %v1703, %v1702
        %1720 = vmatprep.subr.bf16.mxu0 0
        %1721 = vmatpush1.bf16.msra.mxu0 %v1711
        %1722 = vmatprep.subr.bf16.mxu0 0
        %1723 = vmatpush1.bf16.msra.mxu0 %v1710
        %1724 = vmatprep.subr.bf16.mxu0 0
        %1725 = vmatpush1.bf16.msra.mxu0 %v1709
        %1726 = vmatprep.subr.bf16.mxu0 0
        %1727 = vmatpush1.bf16.msra.mxu0 %v1708
        %1728 = vmatprep.subr.bf16.mxu0 0
        %1729 = vmatpush1.bf16.msra.mxu0 %v1707
        %1730 = vmatprep.subr.bf16.mxu0 0
        %1731 = vmatpush1.bf16.msra.mxu0 %v1706
        %1732 = vmatprep.subr.bf16.mxu0 0
        %1733 = vmatpush1.bf16.msra.mxu0 %v1705
        %1734 = vmatprep.subr.bf16.mxu0 0
        %1735 = vmatpush1.bf16.msra.mxu0 %v1704
        %1736 = vmatprep.subr.bf16.mxu0 0
        %1737 = vmatpush2.bf16.msra.mxu0 0
        %1738 = vmatprep.subr.bf16.mxu0 0
        %1739 = vmatpush2.bf16.msra.mxu0 0
        %1740 = vmatprep.subr.bf16.mxu0 0
        %1741 = vmatpush2.bf16.msra.mxu0 0
        %1742 = vmatprep.subr.bf16.mxu0 0
        %1743 = vmatpush2.bf16.msra.mxu0 0
        %1744 = vmatprep.subr.bf16.mxu0 0
        %1745 = vmatpush2.bf16.msra.mxu0 0
        %1746 = vmatprep.subr.bf16.mxu0 0
        %1747 = vmatpush2.bf16.msra.mxu0 0
        %1748 = vmatprep.subr.bf16.mxu0 0
        %1749 = vmatpush2.bf16.msra.mxu0 0
        %1750 = vmatprep.subr.bf16.mxu0 0
        %1751 = vmatpush2.bf16.msra.mxu0 0
        %1752 = vmatprep.mubr.bf16.mxu0 0
        %1753 = vmatmul.mubr.bf16.gmra.mxu0 %v1656
        %v1754 = vpop.f32.mrf.mxu0
        %v1755 = vadd.f32 0.0, %v1754
        %v1756 = vpop.f32.mrf.mxu0
        %v1757 = vpop.f32.mrf.mxu0
        %v1758 = vadd.f32 0.0, %v1757
        %v1759 = vpop.f32.mrf.mxu0
        %1760 = vmatprep.mubr.bf16.mxu0 0
        %1761 = vmatmul.mubr.bf16.gmra.mxu0 %v1657
        %v1762 = vpop.f32.mrf.mxu0
        %v1763 = vadd.f32 0.0, %v1762
        %v1764 = vpop.f32.mrf.mxu0
        %v1765 = vpop.f32.mrf.mxu0
        %v1766 = vadd.f32 0.0, %v1765
        %v1767 = vpop.f32.mrf.mxu0
        %1768 = vmatprep.mubr.bf16.mxu0 0
        %1769 = vmatmul.mubr.bf16.gmra.mxu0 %v1658
        %v1770 = vpop.f32.mrf.mxu0
        %v1771 = vadd.f32 0.0, %v1770
        %v1772 = vpop.f32.mrf.mxu0
        %v1773 = vpop.f32.mrf.mxu0
        %v1774 = vadd.f32 0.0, %v1773
        %v1775 = vpop.f32.mrf.mxu0
        %1776 = vmatprep.mubr.bf16.mxu0 0
        %1777 = vmatmul.mubr.bf16.gmra.mxu0 %v1659
        %v1778 = vpop.f32.mrf.mxu0
        %v1779 = vadd.f32 0.0, %v1778
        %v1780 = vpop.f32.mrf.mxu0
        %v1781 = vpop.f32.mrf.mxu0
        %v1782 = vadd.f32 0.0, %v1781
        %v1783 = vpop.f32.mrf.mxu0
        %1784 = vmatprep.mubr.bf16.mxu0 0
        %1785 = vmatmul.mubr.bf16.gmra.mxu0 %v1660
        %v1786 = vpop.f32.mrf.mxu0
        %v1787 = vadd.f32 0.0, %v1786
        %v1788 = vpop.f32.mrf.mxu0
        %v1789 = vpop.f32.mrf.mxu0
        %v1790 = vadd.f32 0.0, %v1789
        %v1791 = vpop.f32.mrf.mxu0
        %1792 = vmatprep.mubr.bf16.mxu0 0
        %1793 = vmatmul.mubr.bf16.gmra.mxu0 %v1661
        %v1794 = vpop.f32.mrf.mxu0
        %v1795 = vadd.f32 0.0, %v1794
        %v1796 = vpop.f32.mrf.mxu0
        %v1797 = vpop.f32.mrf.mxu0
        %v1798 = vadd.f32 0.0, %v1797
        %v1799 = vpop.f32.mrf.mxu0
        %1800 = vmatprep.mubr.bf16.mxu0 0
        %1801 = vmatmul.mubr.bf16.gmra.mxu0 %v1662
        %v1802 = vpop.f32.mrf.mxu0
        %v1803 = vadd.f32 0.0, %v1802
        %v1804 = vpop.f32.mrf.mxu0
        %v1805 = vpop.f32.mrf.mxu0
        %v1806 = vadd.f32 0.0, %v1805
        %v1807 = vpop.f32.mrf.mxu0
        %1808 = vmatprep.mubr.bf16.mxu0 0
        %1809 = vmatmul.mubr.bf16.gmra.mxu0 %v1663
        %v1810 = vpop.f32.mrf.mxu0
        %v1811 = vadd.f32 0.0, %v1810
        %v1812 = vpop.f32.mrf.mxu0
        %v1813 = vpop.f32.mrf.mxu0
        %v1814 = vadd.f32 0.0, %v1813
        %v1815 = vpop.f32.mrf.mxu0
        %1816 = vdwg.mxu0
        %v1817 = vmax.f32 %v1755, 0.0
        %v1818 = vmax.f32 %v1758, 0.0
        %v1819 = vmax.f32 %v1763, 0.0
        %v1820 = vmax.f32 %v1766, 0.0
        %v1821 = vmax.f32 %v1771, 0.0
        %v1822 = vmax.f32 %v1774, 0.0
        %v1823 = vmax.f32 %v1779, 0.0
        %v1824 = vmax.f32 %v1782, 0.0
        %v1825 = vmax.f32 %v1787, 0.0
        %v1826 = vmax.f32 %v1790, 0.0
        %v1827 = vmax.f32 %v1795, 0.0
        %v1828 = vmax.f32 %v1798, 0.0
        %v1829 = vmax.f32 %v1803, 0.0
        %v1830 = vmax.f32 %v1806, 0.0
        %v1831 = vmax.f32 %v1811, 0.0
        %v1832 = vmax.f32 %v1814, 0.0
        %1833 = vadd.xlane.f32.xlu0 %v1817
        %v1834 = vpop.xlane.xlu0 %1833
        %1835 = vadd.xlane.f32.xlu0 %v1818
        %v1836 = vpop.xlane.xlu0 %1835
        %1837 = vadd.xlane.f32.xlu0 %v1819
        %v1838 = vpop.xlane.xlu0 %1837
        %1839 = vadd.xlane.f32.xlu0 %v1820
        %v1840 = vpop.xlane.xlu0 %1839
        %1841 = vadd.xlane.f32.xlu0 %v1821
        %v1842 = vpop.xlane.xlu0 %1841
        %1843 = vadd.xlane.f32.xlu0 %v1822
        %v1844 = vpop.xlane.xlu0 %1843
        %1845 = vadd.xlane.f32.xlu0 %v1823
        %v1846 = vpop.xlane.xlu0 %1845
        %1847 = vadd.xlane.f32.xlu0 %v1824
        %v1848 = vpop.xlane.xlu0 %1847
        %1849 = vadd.xlane.f32.xlu0 %v1825
        %v1850 = vpop.xlane.xlu0 %1849
        %1851 = vadd.xlane.f32.xlu0 %v1826
        %v1852 = vpop.xlane.xlu0 %1851
        %1853 = vadd.xlane.f32.xlu0 %v1827
        %v1854 = vpop.xlane.xlu0 %1853
        %1855 = vadd.xlane.f32.xlu0 %v1828
        %v1856 = vpop.xlane.xlu0 %1855
        %1857 = vadd.xlane.f32.xlu0 %v1829
        %v1858 = vpop.xlane.xlu0 %1857
        %1859 = vadd.xlane.f32.xlu0 %v1830
        %v1860 = vpop.xlane.xlu0 %1859
        %1861 = vadd.xlane.f32.xlu0 %v1831
        %v1862 = vpop.xlane.xlu0 %1861
        %1863 = vadd.xlane.f32.xlu0 %v1832
        %v1864 = vpop.xlane.xlu0 %1863
        %v1865 = vrcp.pop 128.0
        %v1866 = vmul.f32 %v1834, %v1865
        %v1867 = vmul.f32 %v1836, %v1865
        %v1868 = vmul.f32 %v1838, %v1865
        %v1869 = vmul.f32 %v1840, %v1865
        %v1870 = vmul.f32 %v1842, %v1865
        %v1871 = vmul.f32 %v1844, %v1865
        %v1872 = vmul.f32 %v1846, %v1865
        %v1873 = vmul.f32 %v1848, %v1865
        %v1874 = vmul.f32 %v1850, %v1865
        %v1875 = vmul.f32 %v1852, %v1865
        %v1876 = vmul.f32 %v1854, %v1865
        %v1877 = vmul.f32 %v1856, %v1865
        %v1878 = vmul.f32 %v1858, %v1865
        %v1879 = vmul.f32 %v1860, %v1865
        %v1880 = vmul.f32 %v1862, %v1865
        %v1881 = vmul.f32 %v1864, %v1865
        %v1882 = vsub.f32 %v1817, %v1866
        %v1883 = vsub.f32 %v1818, %v1867
        %v1884 = vsub.f32 %v1819, %v1868
        %v1885 = vsub.f32 %v1820, %v1869
        %v1886 = vsub.f32 %v1821, %v1870
        %v1887 = vsub.f32 %v1822, %v1871
        %v1888 = vsub.f32 %v1823, %v1872
        %v1889 = vsub.f32 %v1824, %v1873
        %v1890 = vsub.f32 %v1825, %v1874
        %v1891 = vsub.f32 %v1826, %v1875
        %v1892 = vsub.f32 %v1827, %v1876
        %v1893 = vsub.f32 %v1828, %v1877
        %v1894 = vsub.f32 %v1829, %v1878
        %v1895 = vsub.f32 %v1830, %v1879
        %v1896 = vsub.f32 %v1831, %v1880
        %v1897 = vsub.f32 %v1832, %v1881
        %v1898 = vmul.f32 %v1882, %v1882
        %v1899 = vmul.f32 %v1883, %v1883
        %v1900 = vmul.f32 %v1884, %v1884
        %v1901 = vmul.f32 %v1885, %v1885
        %v1902 = vmul.f32 %v1886, %v1886
        %v1903 = vmul.f32 %v1887, %v1887
        %v1904 = vmul.f32 %v1888, %v1888
        %v1905 = vmul.f32 %v1889, %v1889
        %v1906 = vmul.f32 %v1890, %v1890
        %v1907 = vmul.f32 %v1891, %v1891
        %v1908 = vmul.f32 %v1892, %v1892
        %v1909 = vmul.f32 %v1893, %v1893
        %v1910 = vmul.f32 %v1894, %v1894
        %v1911 = vmul.f32 %v1895, %v1895
        %v1912 = vmul.f32 %v1896, %v1896
        %v1913 = vmul.f32 %v1897, %v1897
        %1914 = vadd.xlane.f32.xlu0 %v1898
        %v1915 = vpop.xlane.xlu0 %1914
        %1916 = vadd.xlane.f32.xlu0 %v1899
        %v1917 = vpop.xlane.xlu0 %1916
        %1918 = vadd.xlane.f32.xlu0 %v1900
        %v1919 = vpop.xlane.xlu0 %1918
        %1920 = vadd.xlane.f32.xlu0 %v1901
        %v1921 = vpop.xlane.xlu0 %1920
        %1922 = vadd.xlane.f32.xlu0 %v1902
        %v1923 = vpop.xlane.xlu0 %1922
        %1924 = vadd.xlane.f32.xlu0 %v1903
        %v1925 = vpop.xlane.xlu0 %1924
        %1926 = vadd.xlane.f32.xlu0 %v1904
        %v1927 = vpop.xlane.xlu0 %1926
        %1928 = vadd.xlane.f32.xlu0 %v1905
        %v1929 = vpop.xlane.xlu0 %1928
        %1930 = vadd.xlane.f32.xlu0 %v1906
        %v1931 = vpop.xlane.xlu0 %1930
        %1932 = vadd.xlane.f32.xlu0 %v1907
        %v1933 = vpop.xlane.xlu0 %1932
        %1934 = vadd.xlane.f32.xlu0 %v1908
        %v1935 = vpop.xlane.xlu0 %1934
        %1936 = vadd.xlane.f32.xlu0 %v1909
        %v1937 = vpop.xlane.xlu0 %1936
        %1938 = vadd.xlane.f32.xlu0 %v1910
        %v1939 = vpop.xlane.xlu0 %1938
        %1940 = vadd.xlane.f32.xlu0 %v1911
        %v1941 = vpop.xlane.xlu0 %1940
        %1942 = vadd.xlane.f32.xlu0 %v1912
        %v1943 = vpop.xlane.xlu0 %1942
        %1944 = vadd.xlane.f32.xlu0 %v1913
        %v1945 = vpop.xlane.xlu0 %1944
        %v1946 = vmul.f32 %v1915, %v1865
        %v1947 = vmul.f32 %v1917, %v1865
        %v1948 = vmul.f32 %v1919, %v1865
        %v1949 = vmul.f32 %v1921, %v1865
        %v1950 = vmul.f32 %v1923, %v1865
        %v1951 = vmul.f32 %v1925, %v1865
        %v1952 = vmul.f32 %v1927, %v1865
        %v1953 = vmul.f32 %v1929, %v1865
        %v1954 = vmul.f32 %v1931, %v1865
        %v1955 = vmul.f32 %v1933, %v1865
        %v1956 = vmul.f32 %v1935, %v1865
        %v1957 = vmul.f32 %v1937, %v1865
        %v1958 = vmul.f32 %v1939, %v1865
        %v1959 = vmul.f32 %v1941, %v1865
        %v1960 = vmul.f32 %v1943, %v1865
        %v1961 = vmul.f32 %v1945, %v1865
        %v1962 = vadd.f32 %v1946, 1e-05
        %v1963 = vadd.f32 %v1947, 1e-05
        %v1964 = vadd.f32 %v1948, 1e-05
        %v1965 = vadd.f32 %v1949, 1e-05
        %v1966 = vadd.f32 %v1950, 1e-05
        %v1967 = vadd.f32 %v1951, 1e-05
        %v1968 = vadd.f32 %v1952, 1e-05
        %v1969 = vadd.f32 %v1953, 1e-05
        %v1970 = vadd.f32 %v1954, 1e-05
        %v1971 = vadd.f32 %v1955, 1e-05
        %v1972 = vadd.f32 %v1956, 1e-05
        %v1973 = vadd.f32 %v1957, 1e-05
        %v1974 = vadd.f32 %v1958, 1e-05
        %v1975 = vadd.f32 %v1959, 1e-05
        %v1976 = vadd.f32 %v1960, 1e-05
        %v1977 = vadd.f32 %v1961, 1e-05
        %v1978 = vrsqrt.pop %v1962
        %v1979 = vrsqrt.pop %v1963
        %v1980 = vrsqrt.pop %v1964
        %v1981 = vrsqrt.pop %v1965
        %v1982 = vrsqrt.pop %v1966
        %v1983 = vrsqrt.pop %v1967
        %v1984 = vrsqrt.pop %v1968
        %v1985 = vrsqrt.pop %v1969
        %v1986 = vrsqrt.pop %v1970
        %v1987 = vrsqrt.pop %v1971
        %v1988 = vrsqrt.pop %v1972
        %v1989 = vrsqrt.pop %v1973
        %v1990 = vrsqrt.pop %v1974
        %v1991 = vrsqrt.pop %v1975
        %v1992 = vrsqrt.pop %v1976
        %v1993 = vrsqrt.pop %v1977
        %v1994 = vmul.f32 %v1882, %v1978
        %v1995 = vmul.f32 %v1883, %v1979
        %v1996 = vmul.f32 %v1884, %v1980
        %v1997 = vmul.f32 %v1885, %v1981
        %v1998 = vmul.f32 %v1886, %v1982
        %v1999 = vmul.f32 %v1887, %v1983
        %v2000 = vmul.f32 %v1888, %v1984
        %v2001 = vmul.f32 %v1889, %v1985
        %v2002 = vmul.f32 %v1890, %v1986
        %v2003 = vmul.f32 %v1891, %v1987
        %v2004 = vmul.f32 %v1892, %v1988
        %v2005 = vmul.f32 %v1893, %v1989
        %v2006 = vmul.f32 %v1894, %v1990
        %v2007 = vmul.f32 %v1895, %v1991
        %v2008 = vmul.f32 %v1896, %v1992
        %v2009 = vmul.f32 %v1897, %v1993
        %v2010 = vlaneseq
        %v2011 = vshrl.u32 %v2010, 7
        %v2012 = vsub.s32 0, %v2011
        %v2013 = vrot.slane %v405, %v2012
        %v2014 = vmul.f32 %v1994, %v2013
        %v2015 = vmul.f32 %v1995, %v2013
        %v2016 = vmul.f32 %v1996, %v2013
        %v2017 = vmul.f32 %v1997, %v2013
        %v2018 = vmul.f32 %v1998, %v2013
        %v2019 = vmul.f32 %v1999, %v2013
        %v2020 = vmul.f32 %v2000, %v2013
        %v2021 = vmul.f32 %v2001, %v2013
        %v2022 = vmul.f32 %v2002, %v2013
        %v2023 = vmul.f32 %v2003, %v2013
        %v2024 = vmul.f32 %v2004, %v2013
        %v2025 = vmul.f32 %v2005, %v2013
        %v2026 = vmul.f32 %v2006, %v2013
        %v2027 = vmul.f32 %v2007, %v2013
        %v2028 = vmul.f32 %v2008, %v2013
        %v2029 = vmul.f32 %v2009, %v2013
        %v2030 = vlaneseq
        %v2031 = vshrl.u32 %v2030, 7
        %v2032 = vsub.s32 0, %v2031
        %v2033 = vrot.slane %v406, %v2032
        %v2034 = vadd.f32 %v2014, %v2033
        %v2035 = vadd.f32 %v2015, %v2033
        %v2036 = vadd.f32 %v2016, %v2033
        %v2037 = vadd.f32 %v2017, %v2033
        %v2038 = vadd.f32 %v2018, %v2033
        %v2039 = vadd.f32 %v2019, %v2033
        %v2040 = vadd.f32 %v2020, %v2033
        %v2041 = vadd.f32 %v2021, %v2033
        %v2042 = vadd.f32 %v2022, %v2033
        %v2043 = vadd.f32 %v2023, %v2033
        %v2044 = vadd.f32 %v2024, %v2033
        %v2045 = vadd.f32 %v2025, %v2033
        %v2046 = vadd.f32 %v2026, %v2033
        %v2047 = vadd.f32 %v2027, %v2033
        %v2048 = vadd.f32 %v2028, %v2033
        %v2049 = vadd.f32 %v2029, %v2033
        %2050 = vst [vmem:[%s400] sm:$0xff] %v2034
        %2051 = vst [vmem:[%s400 + $0x8] sm:$0xff] %v2035
        %2052 = vst [vmem:[%s400 + $0x10] sm:$0xff] %v2036
        %2053 = vst [vmem:[%s400 + $0x18] sm:$0xff] %v2037
        %2054 = vst [vmem:[%s400 + $0x20] sm:$0xff] %v2038
        %2055 = vst [vmem:[%s400 + $0x28] sm:$0xff] %v2039
        %2056 = vst [vmem:[%s400 + $0x30] sm:$0xff] %v2040
        %2057 = vst [vmem:[%s400 + $0x38] sm:$0xff] %v2041
        %2058 = vst [vmem:[%s400 + $0x40] sm:$0xff] %v2042
        %2059 = vst [vmem:[%s400 + $0x48] sm:$0xff] %v2043
        %2060 = vst [vmem:[%s400 + $0x50] sm:$0xff] %v2044
        %2061 = vst [vmem:[%s400 + $0x58] sm:$0xff] %v2045
        %2062 = vst [vmem:[%s400 + $0x60] sm:$0xff] %v2046
        %2063 = vst [vmem:[%s400 + $0x68] sm:$0xff] %v2047
        %2064 = vst [vmem:[%s400 + $0x70] sm:$0xff] %v2048
        %2065 = vst [vmem:[%s400 + $0x78] sm:$0xff] %v2049
        %s2066 = smul.u32 %s30, 128
        %v2067 = vpack.c.bf16 %v2035, %v2034
        %v2068 = vpack.c.bf16 %v2037, %v2036
        %v2069 = vpack.c.bf16 %v2039, %v2038
        %v2070 = vpack.c.bf16 %v2041, %v2040
        %v2071 = vpack.c.bf16 %v2043, %v2042
        %v2072 = vpack.c.bf16 %v2045, %v2044
        %v2073 = vpack.c.bf16 %v2047, %v2046
        %v2074 = vpack.c.bf16 %v2049, %v2048
        %p2075 = scmp.eq.s32.totalorder %s29, 0
        // Predicated region
        $region93: #{tpu_custom_call.1} parent=47 // pred_check
          %p2076 = pneg %p2075
        $region94: #{tpu_custom_call.1} parent=47 // pred_check_branch
          %2078 = sbr.rel (%p2076) target = $region96
        $region95: #{tpu_custom_call.1} parent=47 // pred_region
          %v2087 = vunpack.c.l.b16 %v2067
          %v2088 = vunpack.c.h.b16 %v2067
          %v2089 = vunpack.c.l.b16 %v2068
          %v2090 = vunpack.c.h.b16 %v2068
          %v2091 = vunpack.c.l.b16 %v2069
          %v2092 = vunpack.c.h.b16 %v2069
          %v2093 = vunpack.c.l.b16 %v2070
          %v2094 = vunpack.c.h.b16 %v2070
          %v2095 = vunpack.c.l.b16 %v2071
          %v2096 = vunpack.c.h.b16 %v2071
          %v2097 = vunpack.c.l.b16 %v2072
          %v2098 = vunpack.c.h.b16 %v2072
          %v2099 = vunpack.c.l.b16 %v2073
          %v2100 = vunpack.c.h.b16 %v2073
          %v2101 = vunpack.c.l.b16 %v2074
          %v2102 = vunpack.c.h.b16 %v2074
          %v2103 = vpack.c.b16 %v2087, %v2087
          %v2104 = vpack.c.b16 %v2088, %v2088
          %v2105 = vpack.c.b16 %v2089, %v2089
          %v2106 = vpack.c.b16 %v2090, %v2090
          %v2107 = vpack.c.b16 %v2091, %v2091
          %v2108 = vpack.c.b16 %v2092, %v2092
          %v2109 = vpack.c.b16 %v2093, %v2093
          %v2110 = vpack.c.b16 %v2094, %v2094
          %v2111 = vpack.c.b16 %v2095, %v2095
          %v2112 = vpack.c.b16 %v2096, %v2096
          %v2113 = vpack.c.b16 %v2097, %v2097
          %v2114 = vpack.c.b16 %v2098, %v2098
          %v2115 = vpack.c.b16 %v2099, %v2099
          %v2116 = vpack.c.b16 %v2100, %v2100
          %v2117 = vpack.c.b16 %v2101, %v2101
          %v2118 = vpack.c.b16 %v2102, %v2102
          %s2135 = sshra.s32 %s2066, 3
          %s2136 = sand.u32 %s2066, 7
          %s2137 = smul.addr %s2135, 4
          %s2138 = scalar_lea.vmem [#allocation3], %s2137
          %2139 = vst [vmem:[%s2138] sm:$0xf] %v2103
          %2140 = vst [vmem:[%s2138 + $0x4] sm:$0xf] %v2104
          %2141 = vst [vmem:[%s2138 + $0x8] sm:$0xf] %v2105
          %2142 = vst [vmem:[%s2138 + $0xc] sm:$0xf] %v2106
          %2143 = vst [vmem:[%s2138 + $0x10] sm:$0xf] %v2107
          %2144 = vst [vmem:[%s2138 + $0x14] sm:$0xf] %v2108
          %2145 = vst [vmem:[%s2138 + $0x18] sm:$0xf] %v2109
          %2146 = vst [vmem:[%s2138 + $0x1c] sm:$0xf] %v2110
          %2147 = vst [vmem:[%s2138 + $0x20] sm:$0xf] %v2111
          %2148 = vst [vmem:[%s2138 + $0x24] sm:$0xf] %v2112
          %2149 = vst [vmem:[%s2138 + $0x28] sm:$0xf] %v2113
          %2150 = vst [vmem:[%s2138 + $0x2c] sm:$0xf] %v2114
          %2151 = vst [vmem:[%s2138 + $0x30] sm:$0xf] %v2115
          %2152 = vst [vmem:[%s2138 + $0x34] sm:$0xf] %v2116
          %2153 = vst [vmem:[%s2138 + $0x38] sm:$0xf] %v2117
          %2154 = vst [vmem:[%s2138 + $0x3c] sm:$0xf] %v2118
        $region96: #{tpu_custom_call.1} parent=47 // pred_fallthru
          _
        %p2155 = scmp.eq.s32.totalorder %s29, 1
        // Predicated region
        $region97: #{tpu_custom_call.1} parent=47 // pred_check
          %p2156 = pneg %p2155
        $region98: #{tpu_custom_call.1} parent=47 // pred_check_branch
          %2158 = sbr.rel (%p2156) target = $region100
        $region99: #{tpu_custom_call.1} parent=47 // pred_region
          %v2167 = vunpack.c.l.b16 %v2067
          %v2168 = vunpack.c.h.b16 %v2067
          %v2169 = vunpack.c.l.b16 %v2068
          %v2170 = vunpack.c.h.b16 %v2068
          %v2171 = vunpack.c.l.b16 %v2069
          %v2172 = vunpack.c.h.b16 %v2069
          %v2173 = vunpack.c.l.b16 %v2070
          %v2174 = vunpack.c.h.b16 %v2070
          %v2175 = vunpack.c.l.b16 %v2071
          %v2176 = vunpack.c.h.b16 %v2071
          %v2177 = vunpack.c.l.b16 %v2072
          %v2178 = vunpack.c.h.b16 %v2072
          %v2179 = vunpack.c.l.b16 %v2073
          %v2180 = vunpack.c.h.b16 %v2073
          %v2181 = vunpack.c.l.b16 %v2074
          %v2182 = vunpack.c.h.b16 %v2074
          %v2183 = vpack.c.b16 %v2167, %v2167
          %v2184 = vpack.c.b16 %v2168, %v2168
          %v2185 = vpack.c.b16 %v2169, %v2169
          %v2186 = vpack.c.b16 %v2170, %v2170
          %v2187 = vpack.c.b16 %v2171, %v2171
          %v2188 = vpack.c.b16 %v2172, %v2172
          %v2189 = vpack.c.b16 %v2173, %v2173
          %v2190 = vpack.c.b16 %v2174, %v2174
          %v2191 = vpack.c.b16 %v2175, %v2175
          %v2192 = vpack.c.b16 %v2176, %v2176
          %v2193 = vpack.c.b16 %v2177, %v2177
          %v2194 = vpack.c.b16 %v2178, %v2178
          %v2195 = vpack.c.b16 %v2179, %v2179
          %v2196 = vpack.c.b16 %v2180, %v2180
          %v2197 = vpack.c.b16 %v2181, %v2181
          %v2198 = vpack.c.b16 %v2182, %v2182
          %s2215 = sshra.s32 %s2066, 3
          %s2216 = sand.u32 %s2066, 7
          %s2217 = sadd.s32 %s2215, 16
          %s2218 = smul.addr %s2217, 4
          %s2219 = scalar_lea.vmem [#allocation3], %s2218
          %2220 = vst [vmem:[%s2219] sm:$0xf] %v2183
          %2221 = vst [vmem:[%s2219 + $0x4] sm:$0xf] %v2184
          %2222 = vst [vmem:[%s2219 + $0x8] sm:$0xf] %v2185
          %2223 = vst [vmem:[%s2219 + $0xc] sm:$0xf] %v2186
          %2224 = vst [vmem:[%s2219 + $0x10] sm:$0xf] %v2187
          %2225 = vst [vmem:[%s2219 + $0x14] sm:$0xf] %v2188
          %2226 = vst [vmem:[%s2219 + $0x18] sm:$0xf] %v2189
          %2227 = vst [vmem:[%s2219 + $0x1c] sm:$0xf] %v2190
          %2228 = vst [vmem:[%s2219 + $0x20] sm:$0xf] %v2191
          %2229 = vst [vmem:[%s2219 + $0x24] sm:$0xf] %v2192
          %2230 = vst [vmem:[%s2219 + $0x28] sm:$0xf] %v2193
          %2231 = vst [vmem:[%s2219 + $0x2c] sm:$0xf] %v2194
          %2232 = vst [vmem:[%s2219 + $0x30] sm:$0xf] %v2195
          %2233 = vst [vmem:[%s2219 + $0x34] sm:$0xf] %v2196
          %2234 = vst [vmem:[%s2219 + $0x38] sm:$0xf] %v2197
          %2235 = vst [vmem:[%s2219 + $0x3c] sm:$0xf] %v2198
        $region100: #{tpu_custom_call.1} parent=47 // pred_fallthru
          _
        %s2236 = sand.u32 %s204, 1
        %s2237 = scalar_lea.sflag [#allocation6], %s2236
        %s2238 = sand.u32 %s204, 1
        %s2239 = smul.addr %s2238, 128
        %s2240 = scalar_lea.vmem [#allocation16], %s2239
        // Predicated region
        $region101: #{tpu_custom_call.1} parent=47 // pred_check
          %p2241 = pneg %p214
        $region102: #{tpu_custom_call.1} parent=47 // pred_check_branch
          %2243 = sbr.rel (%p2241) target = $region104
        $region103: #{tpu_custom_call.1} parent=47 // pred_region
          %s2244 = smul.u32 16, %s30
          %s2246 = ssub.s32 2048, 2048
          %2247 = vsyncadd %s2237, %s2246
          %s2248 = smul.addr %s29, 16
          %s2249 = sadd.s32 %s2244, %s2248
          %s2250 = smul.addr %s2249, 128
          %s2251 = scalar_lea.hbm %s7, %s2250
          %s2252 = sshll.u32 %s2240, 4
          %s2253 = int_to_ptr.vmem [resolvable:$true] %s2252
          %2258 = dma.vmem_to_hbm [thread:$0]  %s2253, 2048, %s2251, %s2237, 128, 128, 8
        $region104: #{tpu_custom_call.1} parent=47 // pred_fallthru
          _
      $region48: #{tpu_custom_call.1} parent=5 // pred_fallthru
        _
      %p2259 = scmp.le.s32.totalorder 2, %s20
      // Predicated region
      $region105: #{tpu_custom_call.1} parent=5 // pred_check
        %p2260 = pneg %p2259
      $region106: #{tpu_custom_call.1} parent=5 // pred_check_branch
        %2262 = sbr.rel (%p2260) target = $region108
      $region107: #{tpu_custom_call.1} parent=5 // pred_region
        %s2263 = ssub.s32 %s20, 2
        // Predicated region
        $region109: #{tpu_custom_call.1} parent=107 // pred_check
          %p2264 = pneg %p220
        $region110: #{tpu_custom_call.1} parent=107 // pred_check_branch
          %2266 = sbr.rel (%p2264) target = $region112
        $region111: #{tpu_custom_call.1} parent=107 // pred_region
          %s2267 = sand.u32 %s205, 1
          %s2268 = scalar_lea.sflag [#allocation6], %s2267
          %s2269 = sand.u32 %s205, 1
          %s2270 = smul.addr %s2269, 128
          %s2271 = scalar_lea.vmem [#allocation16], %s2270
          %2272 = dma.done %s2268, 2048
        $region112: #{tpu_custom_call.1} parent=107 // pred_fallthru
          _
      $region108: #{tpu_custom_call.1} parent=5 // pred_fallthru
        _
    $region6: #{tpu_custom_call.1} parent=1 // loop_footer
      %s24 = sadd.s32 1, %s20
    $region7: #{tpu_custom_call.1} parent=1 // loop_footer_branch
      %19 = sbr.rel target = $region3
    $region8: #{tpu_custom_call.1} parent=1 // loop_exit
      _
    %2273 = vsyncpa [#allocation5], 1
    %s2274 = scalar_lea.sflag [#allocation5], 1
    %2275 = vsyncpa %s2274, 1
    %2276 = vsyncpa [#allocation8], 1
    %2277 = vsyncpa [#allocation11], 1
    %2278 = vsyncpa [#allocation14], 1
    %2279 = vsyncpa [#allocation6], 1
    %s2280 = scalar_lea.sflag [#allocation6], 1
    %2281 = vsyncpa %s2280, 1

</llo_original>
